<compile_context>
chip_gen: v7x
topology: tpu7x:2x2x1
jax: 0.10.0
libtpu: 0.0.40
codegen_flags: <defaults>
</compile_context>

<pallas_src>
import jax
import jax.numpy as jnp
from jax.experimental import pallas as pl
from jax.experimental.pallas import tpu as pltpu


def _round_up(x, m):
    return (x + m - 1) // m * m


# ------------------------------ PFN reader ---------------------------------

def _pfn_kernel(pts_ref, npts_ref, w_ref, b_ref, out_ref):
    """PillarFeatureNet-style reader: linear -> ReLU -> masked max over points.

    pts_ref : (TN, P, C) bf16 voxel point features
    npts_ref: (TN, 1)    int32 number of valid points per voxel
    w_ref   : (C, F)     bf16 linear weight;  b_ref: (1, F) f32 bias
    out_ref : (TN, F)    bf16 per-voxel feature
    """
    TN, P, C = pts_ref.shape
    F = w_ref.shape[1]
    # single large matmul over all points of the tile (M = TN * P)
    x = pts_ref[...].reshape(TN * P, C)
    y = jnp.dot(x, w_ref[...], preferred_element_type=jnp.float32)
    y = jnp.maximum(y + b_ref[...], 0.0).reshape(TN, P, F)
    # validity mask computed in-kernel (no HBM mask tensor)
    npts = npts_ref[...][:, None, :]                                  # (TN, 1, 1)
    pidx = jax.lax.broadcasted_iota(jnp.int32, (TN, P, 1), 1)
    y = y * (pidx < npts).astype(jnp.float32)
    # NOTE: zero-init max is valid because ReLU keeps valid features >= 0.
    out_ref[...] = jnp.max(y, axis=1).astype(out_ref.dtype)


def pfn_forward(voxels, num_points, w, b, *, max_tile=512):
    N, P, C = voxels.shape
    F = w.shape[1]
    tile = min(max_tile, _round_up(N, 8))
    n_pad = _round_up(N, tile)
    if n_pad != N:  # tail handling via padding (padded voxels have mask == 0)
        voxels = jnp.pad(voxels, ((0, n_pad - N), (0, 0), (0, 0)))
        num_points = jnp.pad(num_points, (0, n_pad - N))
    pts = voxels.astype(jnp.bfloat16)
    npts = num_points.reshape(n_pad, 1).astype(jnp.int32)
    out = pl.pallas_call(
        _pfn_kernel,
        out_shape=jax.ShapeDtypeStruct((n_pad, F), jnp.bfloat16),
        grid=(n_pad // tile,),
        in_specs=[
            pl.BlockSpec((tile, P, C), lambda i: (i, 0, 0)),
            pl.BlockSpec((tile, 1), lambda i: (i, 0)),
            pl.BlockSpec((C, F), lambda i: (0, 0)),
            pl.BlockSpec((1, F), lambda i: (0, 0)),
        ],
        out_specs=pl.BlockSpec((tile, F), lambda i: (i, 0)),
        compiler_params=pltpu.CompilerParams(dimension_semantics=("parallel",)),
    )(pts, npts, w, b)
    return out[:N]


# -------------------- fused neck (2x conv3x3) + motion head ------------------

_TAPS = tuple((i, j) for i in range(3) for j in range(3))
_PAD = 8  # sublane-aligned placement of the neck1 tile inside its VMEM scratch


def _fused_neck_head_kernel(xp_ref, w1_ref, b1_ref, w2_ref, b2_ref,
                            wh_ref, bh_ref, out_ref, y1_ref):
    """neck1 (3x3+ReLU) -> neck2 (3x3+ReLU) -> 1x1 head; one BEV image per step.

    xp_ref : (1, H+2, W+2, Cin) bf16, zero halo already in place
    w1/w2  : (9, Cin, Cout) bf16 conv taps;  b1/b2: (1, Cout) f32
    wh_ref : (Cout_head, C2) bf16;           bh_ref: (1, Cout_head) f32
    out_ref: (1, Cout_head, H, W) f32  -- NCHW written directly
    y1_ref : f32 VMEM scratch holding neck1's output inside a zero ring
    """
    _, Hp, Wp, Cin = xp_ref.shape
    H, W = Hp - 2, Wp - 2
    C1 = w1_ref.shape[2]
    C2 = w2_ref.shape[2]
    Cout = out_ref.shape[1]

    # ---- neck1: 9 shifted bf16 matmuls, f32 accumulate ----
    acc1 = jnp.zeros((H * W, C1), jnp.float32)
    for t, (di, dj) in enumerate(_TAPS):
        xs = xp_ref[0, di:di + H, dj:dj + W, :].reshape(H * W, Cin)
        acc1 = acc1 + jnp.dot(xs, w1_ref[t], preferred_element_type=jnp.float32)
    y1 = jnp.maximum(acc1 + b1_ref[...], 0.0)

    # Keep neck1's output resident in VMEM surrounded by zeros (== neck2's zero
    # padding).  The tile is placed at offset _PAD so the store is
    # sublane-aligned; the nine halo reads below absorb the +/-1 offsets.
    y1_ref[...] = jnp.zeros_like(y1_ref)
    y1_ref[_PAD:_PAD + H, _PAD:_PAD + W, :] = y1.reshape(H, W, C1)

    # ---- neck2: 9 shifted bf16 matmuls over the zero-ringed neck1 output ----
    acc2 = jnp.zeros((H * W, C2), jnp.float32)
    for t, (di, dj) in enumerate(_TAPS):
        r0, c0 = _PAD - 1 + di, _PAD - 1 + dj
        ys = y1_ref[r0:r0 + H, c0:c0 + W, :].astype(jnp.bfloat16).reshape(H * W, C1)
        acc2 = acc2 + jnp.dot(ys, w2_ref[t], preferred_element_type=jnp.float32)
    y2 = jnp.maximum(acc2 + b2_ref[...], 0.0).reshape(H, W, C2)

    # ---- motion head: 1x1 conv emitted as per-channel (H, W) planes (NCHW) ----
    for c in range(Cout):
        wc = wh_ref[c:c + 1, :].astype(jnp.float32)                   # (1, C2)
        plane = jnp.sum(y2 * wc, axis=-1) + bh_ref[0:1, c:c + 1]      # (H, W)
        out_ref[0, c, :, :] = plane.astype(out_ref.dtype)


def fused_neck_head(bev_padded, w1, b1, w2, b2, wh, bh):
    B, Hp, Wp, Cin = bev_padded.shape
    H, W = Hp - 2, Wp - 2
    C1 = w1.shape[2]
    C2 = w2.shape[2]
    Cout = wh.shape[0]
    # TODO(synk): for production-size BEV grids, add an H-tile grid axis with a
    # manual halo DMA (pl.ANY + pltpu.make_async_copy) and size the scratch for
    # v7x's 64 MiB VMEM; the whole-image-per-batch block used here fits the test
    # grid and already gives >= 2 parallel steps for megacore sharding.
    return pl.pallas_call(
        _fused_neck_head_kernel,
        out_shape=jax.ShapeDtypeStruct((B, Cout, H, W), jnp.float32),
        grid=(B,),
        in_specs=[
            pl.BlockSpec((1, Hp, Wp, Cin), lambda b: (b, 0, 0, 0)),
            pl.BlockSpec((9, Cin, C1), lambda b: (0, 0, 0)),
            pl.BlockSpec((1, C1), lambda b: (0, 0)),
            pl.BlockSpec((9, C1, C2), lambda b: (0, 0, 0)),
            pl.BlockSpec((1, C2), lambda b: (0, 0)),
            pl.BlockSpec((Cout, C2), lambda b: (0, 0)),
            pl.BlockSpec((1, Cout), lambda b: (0, 0)),
        ],
        out_specs=pl.BlockSpec((1, Cout, H, W), lambda b: (b, 0, 0, 0)),
        scratch_shapes=[pltpu.VMEM((H + _PAD + 1, W + _PAD + 1, C1), jnp.float32)],
        compiler_params=pltpu.CompilerParams(dimension_semantics=("parallel",)),
    )(bev_padded, w1, b1, w2, b2, wh, bh)


# --------------------------- model definition ------------------------------

def init_params(key, c_point=4, c_feat=32, c_neck=64, c_out=2):
    ks = jax.random.split(key, 8)

    def w(k, fan_in, shape):  # bf16 matmul weights (f32 accumulation in-kernel)
        return (jax.random.normal(k, shape, jnp.float32) / jnp.sqrt(fan_in)
                ).astype(jnp.bfloat16)

    def b(k, shape):          # f32 biases
        return 0.01 * jax.random.normal(k, shape, jnp.float32)

    return {
        "pfn_w": w(ks[0], c_point, (c_point, c_feat)),
        "pfn_b": b(ks[1], (1, c_feat)),
        "neck1_w": w(ks[2], 9 * c_feat, (9, c_feat, c_neck)),
        "neck1_b": b(ks[3], (1, c_neck)),
        "neck2_w": w(ks[4], 9 * c_neck, (9, c_neck, c_neck)),
        "neck2_b": b(ks[5], (1, c_neck)),
        "head_w": w(ks[6], c_neck, (c_out, c_neck)),   # (out, in) like torch 1x1 conv
        "head_b": b(ks[7], (1, c_out)),
    }


def motionnet_forward(params, example):
    """Inference (non-training) forward pass of MotionNet."""
    voxels = example["voxels"]          # (N, P, Cp)
    coords = example["coordinates"]     # (N, 4) = (batch, z, y, x)
    num_points = example["num_points"]  # (N,)
    num_voxels = example["num_voxels"]  # python list; batch_size = len(...)
    H, W = example["shape"][0][:2]      # static BEV grid shape

    N, P, Cp = voxels.shape
    B = len(num_voxels)

    # reader: PFN-style linear -> ReLU -> masked max over points (Pallas, bf16)
    vfeat = pfn_forward(voxels, num_points, params["pfn_w"], params["pfn_b"])
    F = vfeat.shape[1]

    # backbone: PointPillars-style scatter onto a zero-initialised BEV canvas
    # that is pre-padded by 1 pixel, so the fused conv kernel gets its zero halo
    # for free (no jnp.pad pass).
    # TODO(synk): data-dependent scatter (duplicate / invalid coords handling)
    # stays in XLA; a Pallas version needs PrefetchScalarGridSpec-driven DMA.
    Hp, Wp = H + 2, W + 2
    flat_idx = (coords[:, 0] * (Hp * Wp)
                + (coords[:, 2] + 1) * Wp
                + (coords[:, 3] + 1))
    canvas = jnp.zeros((B * Hp * Wp, F), jnp.bfloat16).at[flat_idx].set(vfeat)
    bev_padded = canvas.reshape(B, Hp, Wp, F)

    # neck (2x conv3x3+ReLU) + motion head (1x1), fused in one Pallas kernel,
    # writing NCHW directly.
    preds = fused_neck_head(bev_padded,
                            params["neck1_w"], params["neck1_b"],
                            params["neck2_w"], params["neck2_b"],
                            params["head_w"], params["head_b"])
    return {"motion": preds}


# ------------------------ pure-JAX reference (check) ------------------------

def motionnet_reference(params, example):
    """Mirrors the kernel's bf16 rounding of matmul operands (f32 accumulation)."""
    f32 = jnp.float32
    HI = jax.lax.Precision.HIGHEST
    voxels = example["voxels"]
    coords = example["coordinates"]
    num_points = example["num_points"]
    num_voxels = example["num_voxels"]
    H, W = example["shape"][0][:2]
    N, P, Cp = voxels.shape
    B = len(num_voxels)

    # reader
    v = voxels.astype(jnp.bfloat16).astype(f32)
    y = jnp.einsum("npc,cf->npf", v, params["pfn_w"].astype(f32), precision=HI)
    y = jnp.maximum(y + params["pfn_b"], 0.0)
    mask = (jnp.arange(P)[None, :] < num_points[:, None]).astype(f32)[..., None]
    vfeat = jnp.max(y * mask, axis=1).astype(jnp.bfloat16)
    F = vfeat.shape[1]

    flat_idx = coords[:, 0] * (H * W) + coords[:, 2] * W + coords[:, 3]
    canvas = jnp.zeros((B * H * W, F), jnp.bfloat16).at[flat_idx].set(vfeat)
    x = canvas.reshape(B, H, W, F)

    def conv3x3_relu(x_in, w9, bias):
        Bc, Hc, Wc, Cc = x_in.shape
        xp = jnp.pad(x_in.astype(f32), ((0, 0), (1, 1), (1, 1), (0, 0)))
        acc = jnp.zeros((Bc, Hc, Wc, w9.shape[2]), f32)
        for t, (i, j) in enumerate([(a, b) for a in range(3) for b in range(3)]):
            acc = acc + jnp.einsum("bhwc,cf->bhwf",
                                   xp[:, i:i + Hc, j:j + Wc, :],
                                   w9[t].astype(f32), precision=HI)
        return jnp.maximum(acc + bias, 0.0)

    y1 = conv3x3_relu(x, params["neck1_w"], params["neck1_b"]).astype(jnp.bfloat16)
    y2 = conv3x3_relu(y1, params["neck2_w"], params["neck2_b"])     # f32
    out = jnp.einsum("bhwc,oc->bohw", y2, params["head_w"].astype(f32), precision=HI)
    out = out + params["head_b"][0][None, :, None, None]
    return {"motion": out}


# --------------------------------- main -------------------------------------

if __name__ == "__main__":
    key = jax.random.PRNGKey(0)
    kp, kv, kn, kc = jax.random.split(key, 4)

    B, H, W = 2, 16, 16          # BEV grid
    N_PER, P, CP = 32, 8, 4      # voxels per sample, points per voxel, point dim
    N = B * N_PER

    params = init_params(kp)

    voxels = jax.random.normal(kv, (N, P, CP), jnp.float32)
    num_points = jax.random.randint(kn, (N,), 1, P + 1)

    # distinct BEV cells per sample (avoid scatter collisions)
    cell_perm = jax.random.permutation(kc, H * W)[:N_PER]
    ys, xs = cell_perm // W, cell_perm % W
    coords = jnp.stack(
        [
            jnp.repeat(jnp.arange(B), N_PER),
            jnp.zeros((N,), jnp.int32),
            jnp.tile(ys, B),
            jnp.tile(xs, B),
        ],
        axis=1,
    ).astype(jnp.int32)

    example = {
        "voxels": voxels,
        "coordinates": coords,
        "num_points": num_points,
        "num_voxels": [N_PER] * B,
        "shape": ((H, W, 1),),
    }

    out = motionnet_forward(params, example)
    jax.block_until_ready(out["motion"])

    ref = motionnet_reference(params, example)
    assert out["motion"].shape == (B, 2, H, W)
    max_err = jnp.max(jnp.abs(out["motion"] - ref["motion"]))
    assert jnp.allclose(out["motion"], ref["motion"], atol=2e-3, rtol=2e-3), max_err

    print("KERNEL_OK")
</pallas_src>

<mosaic_0001>
module attributes {stable_mosaic.version = 11 : i64} {
  func.func @_pfn_kernel(%arg0: i32, %arg1: memref<64x8x4xbf16, #tpu.memory_space<vmem>>, %arg2: memref<64x1xi32, #tpu.memory_space<vmem>>, %arg3: memref<4x32xbf16, #tpu.memory_space<vmem>>, %arg4: memref<1x32xf32, #tpu.memory_space<vmem>>, %arg5: memref<64x32xbf16, #tpu.memory_space<vmem>>) attributes {dimension_semantics = [#tpu.dimension_semantics<parallel>], iteration_bounds = array<i64: 1>, scalar_prefetch = 0 : i64, scratch_operands = 0 : i64, tpu.core_type = #tpu.core_type<tc>, window_params = [{transform_indices = @transform_0, window_bounds = array<i64: 64, 8, 4>}, {transform_indices = @transform_1, window_bounds = array<i64: 64, 1>}, {pipeline_mode = #tpu.pipeline_mode<synchronous>, transform_indices = @transform_2, window_bounds = array<i64: 4, 32>}, {pipeline_mode = #tpu.pipeline_mode<synchronous>, transform_indices = @transform_3, window_bounds = array<i64: 1, 32>}, {transform_indices = @transform_4, window_bounds = array<i64: 64, 32>}]} {
    %c0 = arith.constant 0 : index
    %c0_0 = arith.constant 0 : index
    %c0_1 = arith.constant 0 : index
    %0 = vector.load %arg1[%c0, %c0_0, %c0_1] : memref<64x8x4xbf16, #tpu.memory_space<vmem>>, vector<64x8x4xbf16>
    %1 = vector.shape_cast %0 : vector<64x8x4xbf16> to vector<512x4xbf16>
    %c0_2 = arith.constant 0 : index
    %c0_3 = arith.constant 0 : index
    %2 = vector.load %arg3[%c0_2, %c0_3] : memref<4x32xbf16, #tpu.memory_space<vmem>>, vector<4x32xbf16>
    %cst = arith.constant dense<0.000000e+00> : vector<512x32xf32>
    %3 = tpu.matmul %1, %2, %cst {dimension_numbers = #tpu.dot_dimension_numbers<[1], [0], [0], [1], [0, 0, 1, 1], [], []>} : vector<512x4xbf16>, vector<4x32xbf16>, vector<512x32xf32> -> vector<512x32xf32>
    %c0_4 = arith.constant 0 : index
    %c0_5 = arith.constant 0 : index
    %4 = vector.load %arg4[%c0_4, %c0_5] : memref<1x32xf32, #tpu.memory_space<vmem>>, vector<1x32xf32>
    %5 = vector.broadcast %4 : vector<1x32xf32> to vector<512x32xf32>
    %6 = arith.addf %3, %5 : vector<512x32xf32>
    %cst_6 = arith.constant 0.000000e+00 : f32
    %7 = vector.broadcast %cst_6 : f32 to vector<512x32xf32>
    %8 = arith.maximumf %6, %7 : vector<512x32xf32>
    %9 = vector.shape_cast %8 : vector<512x32xf32> to vector<64x8x32xf32>
    %c0_7 = arith.constant 0 : index
    %c0_8 = arith.constant 0 : index
    %10 = vector.load %arg2[%c0_7, %c0_8] : memref<64x1xi32, #tpu.memory_space<vmem>>, vector<64x1xi32>
    %11 = vector.shape_cast %10 : vector<64x1xi32> to vector<64x1x1xi32>
    %12 = tpu.iota {dimensions = array<i32: 1>} : vector<64x8x1xi32>
    %13 = vector.broadcast %11 : vector<64x1x1xi32> to vector<64x8x1xi32>
    %14 = arith.cmpi slt, %12, %13 : vector<64x8x1xi32>
    %15 = arith.extui %14 : vector<64x8x1xi1> to vector<64x8x1xi32>
    %16 = arith.sitofp %15 : vector<64x8x1xi32> to vector<64x8x1xf32>
    %17 = vector.broadcast %16 : vector<64x8x1xf32> to vector<64x8x32xf32>
    %18 = arith.mulf %9, %17 : vector<64x8x32xf32>
    %cst_9 = arith.constant dense<0xFF800000> : vector<64x32xf32>
    %19 = vector.multi_reduction <maximumf>, %18, %cst_9 [1] : vector<64x8x32xf32> to vector<64x32xf32>
    %20 = arith.truncf %19 : vector<64x32xf32> to vector<64x32xbf16>
    %c0_10 = arith.constant 0 : index
    %c0_11 = arith.constant 0 : index
    %21 = vector.load %arg5[%c0_10, %c0_11] : memref<64x32xbf16, #tpu.memory_space<vmem>>, vector<64x32xbf16>
    tpu.vector_store %arg5[%c0_10, %c0_11], %20 {strides = array<i32>} : memref<64x32xbf16, #tpu.memory_space<vmem>>, vector<64x32xbf16>,
    return
  }
  func.func @transform_0(%arg0: i32) -> (i32, i32, i32) {
    %c0_i32 = arith.constant 0 : i32
    %c0_i32_0 = arith.constant 0 : i32
    %c0_i32_1 = arith.constant 0 : i32
    return %arg0, %c0_i32, %c0_i32_0 : i32, i32, i32
  }
  func.func @transform_1(%arg0: i32) -> (i32, i32) {
    %c0_i32 = arith.constant 0 : i32
    %c0_i32_0 = arith.constant 0 : i32
    return %arg0, %c0_i32 : i32, i32
  }
  func.func @transform_2(%arg0: i32) -> (i32, i32) {
    %c0_i32 = arith.constant 0 : i32
    %c0_i32_0 = arith.constant 0 : i32
    %c0_i32_1 = arith.constant 0 : i32
    return %c0_i32, %c0_i32_0 : i32, i32
  }
  func.func @transform_3(%arg0: i32) -> (i32, i32) {
    %c0_i32 = arith.constant 0 : i32
    %c0_i32_0 = arith.constant 0 : i32
    %c0_i32_1 = arith.constant 0 : i32
    return %c0_i32, %c0_i32_0 : i32, i32
  }
  func.func @transform_4(%arg0: i32) -> (i32, i32) {
    %c0_i32 = arith.constant 0 : i32
    %c0_i32_0 = arith.constant 0 : i32
    return %arg0, %c0_i32 : i32, i32
  }
}

</mosaic_0001>

<llo_original>
// kernel: tpu_custom_call.1
$region0: #{tpu_custom_call.1}
  #allocation0 [shape = 'u32[]', space=smem, size = 0x4, offset = 0x4, fixed_abs, tag = 'smem constant byte address 0x4 - core index']
  #allocation1 [shape = 'u32[144,128]{1,0:T(1,128)}', space=vmem, size = 0x12000, scoped, tag = 'internal scratch']
  %s0 = inlined_call_operand.vmem [shape: bf16[64,8,4], index: 0, kind: input, shape index: {}]
  %s1 = inlined_call_operand.vmem [shape: s32[64,1], index: 1, kind: input, shape index: {}]
  %s2 = inlined_call_operand.vmem [shape: bf16[4,32], index: 2, kind: input, shape index: {}]
  %s3 = inlined_call_operand.vmem [shape: f32[1,32], index: 3, kind: input, shape index: {}]
  %s4 = inlined_call_operand.vmem [shape: bf16[64,32], index: 4, kind: output, shape index: {}]
  %s5 = sld [smem:[#allocation0]]
  $region26: #{tpu_custom_call.1} parent=0
    _
  %s7 = ssub.s32 1, %s5
  %s8 = scalar_select 0, %s7, %s5
  // Predicated region
  $region2: #{tpu_custom_call.1} parent=0 // pred_check
    _
  $region3: #{tpu_custom_call.1} parent=0 // pred_check_branch
    %10 = sbr.rel (0) target = $region5
  $region4: #{tpu_custom_call.1} parent=0 // pred_region
    _
  $region5: #{tpu_custom_call.1} parent=0 // pred_fallthru
    _
  // Predicated region
  $region6: #{tpu_custom_call.1} parent=0 // pred_check
    _
  $region7: #{tpu_custom_call.1} parent=0 // pred_check_branch
    %12 = sbr.rel (0) target = $region9
  $region8: #{tpu_custom_call.1} parent=0 // pred_region
    _
  $region9: #{tpu_custom_call.1} parent=0 // pred_fallthru
    _
  // Predicated region
  $region10: #{tpu_custom_call.1} parent=0 // pred_check
    _
  $region11: #{tpu_custom_call.1} parent=0 // pred_check_branch
    %14 = sbr.rel (0) target = $region13
  $region12: #{tpu_custom_call.1} parent=0 // pred_region
    _
  $region13: #{tpu_custom_call.1} parent=0 // pred_fallthru
    _
  // Predicated region
  $region14: #{tpu_custom_call.1} parent=0 // pred_check
    _
  $region15: #{tpu_custom_call.1} parent=0 // pred_check_branch
    %16 = sbr.rel (0) target = $region17
  $region16: #{tpu_custom_call.1} parent=0 // pred_region
    _
  $region17: #{tpu_custom_call.1} parent=0 // pred_fallthru
    _
  %v18 = vld [vmem:[%s0] sm:$0xf]
  %v19 = vld [vmem:[%s0 + $0x4] sm:$0xf]
  %v20 = vld [vmem:[%s0 + $0x8] sm:$0xf]
  %v21 = vld [vmem:[%s0 + $0xc] sm:$0xf]
  %v22 = vld [vmem:[%s0 + $0x10] sm:$0xf]
  %v23 = vld [vmem:[%s0 + $0x14] sm:$0xf]
  %v24 = vld [vmem:[%s0 + $0x18] sm:$0xf]
  %v25 = vld [vmem:[%s0 + $0x1c] sm:$0xf]
  %v26 = vld [vmem:[%s0 + $0x20] sm:$0xf]
  %v27 = vld [vmem:[%s0 + $0x24] sm:$0xf]
  %v28 = vld [vmem:[%s0 + $0x28] sm:$0xf]
  %v29 = vld [vmem:[%s0 + $0x2c] sm:$0xf]
  %v30 = vld [vmem:[%s0 + $0x30] sm:$0xf]
  %v31 = vld [vmem:[%s0 + $0x34] sm:$0xf]
  %v32 = vld [vmem:[%s0 + $0x38] sm:$0xf]
  %v33 = vld [vmem:[%s0 + $0x3c] sm:$0xf]
  %v34 = vld [vmem:[%s0 + $0x40] sm:$0xf]
  %v35 = vld [vmem:[%s0 + $0x44] sm:$0xf]
  %v36 = vld [vmem:[%s0 + $0x48] sm:$0xf]
  %v37 = vld [vmem:[%s0 + $0x4c] sm:$0xf]
  %v38 = vld [vmem:[%s0 + $0x50] sm:$0xf]
  %v39 = vld [vmem:[%s0 + $0x54] sm:$0xf]
  %v40 = vld [vmem:[%s0 + $0x58] sm:$0xf]
  %v41 = vld [vmem:[%s0 + $0x5c] sm:$0xf]
  %v42 = vld [vmem:[%s0 + $0x60] sm:$0xf]
  %v43 = vld [vmem:[%s0 + $0x64] sm:$0xf]
  %v44 = vld [vmem:[%s0 + $0x68] sm:$0xf]
  %v45 = vld [vmem:[%s0 + $0x6c] sm:$0xf]
  %v46 = vld [vmem:[%s0 + $0x70] sm:$0xf]
  %v47 = vld [vmem:[%s0 + $0x74] sm:$0xf]
  %v48 = vld [vmem:[%s0 + $0x78] sm:$0xf]
  %v49 = vld [vmem:[%s0 + $0x7c] sm:$0xf]
  %v50 = vld [vmem:[%s0 + $0x80] sm:$0xf]
  %v51 = vld [vmem:[%s0 + $0x84] sm:$0xf]
  %v52 = vld [vmem:[%s0 + $0x88] sm:$0xf]
  %v53 = vld [vmem:[%s0 + $0x8c] sm:$0xf]
  %v54 = vld [vmem:[%s0 + $0x90] sm:$0xf]
  %v55 = vld [vmem:[%s0 + $0x94] sm:$0xf]
  %v56 = vld [vmem:[%s0 + $0x98] sm:$0xf]
  %v57 = vld [vmem:[%s0 + $0x9c] sm:$0xf]
  %v58 = vld [vmem:[%s0 + $0xa0] sm:$0xf]
  %v59 = vld [vmem:[%s0 + $0xa4] sm:$0xf]
  %v60 = vld [vmem:[%s0 + $0xa8] sm:$0xf]
  %v61 = vld [vmem:[%s0 + $0xac] sm:$0xf]
  %v62 = vld [vmem:[%s0 + $0xb0] sm:$0xf]
  %v63 = vld [vmem:[%s0 + $0xb4] sm:$0xf]
  %v64 = vld [vmem:[%s0 + $0xb8] sm:$0xf]
  %v65 = vld [vmem:[%s0 + $0xbc] sm:$0xf]
  %v66 = vld [vmem:[%s0 + $0xc0] sm:$0xf]
  %v67 = vld [vmem:[%s0 + $0xc4] sm:$0xf]
  %v68 = vld [vmem:[%s0 + $0xc8] sm:$0xf]
  %v69 = vld [vmem:[%s0 + $0xcc] sm:$0xf]
  %v70 = vld [vmem:[%s0 + $0xd0] sm:$0xf]
  %v71 = vld [vmem:[%s0 + $0xd4] sm:$0xf]
  %v72 = vld [vmem:[%s0 + $0xd8] sm:$0xf]
  %v73 = vld [vmem:[%s0 + $0xdc] sm:$0xf]
  %v74 = vld [vmem:[%s0 + $0xe0] sm:$0xf]
  %v75 = vld [vmem:[%s0 + $0xe4] sm:$0xf]
  %v76 = vld [vmem:[%s0 + $0xe8] sm:$0xf]
  %v77 = vld [vmem:[%s0 + $0xec] sm:$0xf]
  %v78 = vld [vmem:[%s0 + $0xf0] sm:$0xf]
  %v79 = vld [vmem:[%s0 + $0xf4] sm:$0xf]
  %v80 = vld [vmem:[%s0 + $0xf8] sm:$0xf]
  %v81 = vld [vmem:[%s0 + $0xfc] sm:$0xf]
  %v82 = vld [vmem:[%s2] sm:$0x3]
  %v83 = vld [vmem:[%s3] sm:$0x1]
  %v85 = vlaneseq
  %v86 = vshrl.u32 %v85, 7
  %v87 = vsub.s32 0, %v86
  %v88 = vrot.slane %v83, %v87
  %v154 = vunpack.c.l.b16 %v18
  %v155 = vunpack.c.l.b16 %v19
  %v156 = vunpack.c.l.b16 %v20
  %v157 = vunpack.c.l.b16 %v21
  %v158 = vunpack.c.l.b16 %v22
  %v159 = vunpack.c.l.b16 %v23
  %v160 = vunpack.c.l.b16 %v24
  %v161 = vunpack.c.l.b16 %v25
  %v162 = vunpack.c.l.b16 %v26
  %v163 = vunpack.c.l.b16 %v27
  %v164 = vunpack.c.l.b16 %v28
  %v165 = vunpack.c.l.b16 %v29
  %v166 = vunpack.c.l.b16 %v30
  %v167 = vunpack.c.l.b16 %v31
  %v168 = vunpack.c.l.b16 %v32
  %v169 = vunpack.c.l.b16 %v33
  %v170 = vunpack.c.l.b16 %v34
  %v171 = vunpack.c.l.b16 %v35
  %v172 = vunpack.c.l.b16 %v36
  %v173 = vunpack.c.l.b16 %v37
  %v174 = vunpack.c.l.b16 %v38
  %v175 = vunpack.c.l.b16 %v39
  %v176 = vunpack.c.l.b16 %v40
  %v177 = vunpack.c.l.b16 %v41
  %v178 = vunpack.c.l.b16 %v42
  %v179 = vunpack.c.l.b16 %v43
  %v180 = vunpack.c.l.b16 %v44
  %v181 = vunpack.c.l.b16 %v45
  %v182 = vunpack.c.l.b16 %v46
  %v183 = vunpack.c.l.b16 %v47
  %v184 = vunpack.c.l.b16 %v48
  %v185 = vunpack.c.l.b16 %v49
  %v186 = vunpack.c.l.b16 %v50
  %v187 = vunpack.c.l.b16 %v51
  %v188 = vunpack.c.l.b16 %v52
  %v189 = vunpack.c.l.b16 %v53
  %v190 = vunpack.c.l.b16 %v54
  %v191 = vunpack.c.l.b16 %v55
  %v192 = vunpack.c.l.b16 %v56
  %v193 = vunpack.c.l.b16 %v57
  %v194 = vunpack.c.l.b16 %v58
  %v195 = vunpack.c.l.b16 %v59
  %v196 = vunpack.c.l.b16 %v60
  %v197 = vunpack.c.l.b16 %v61
  %v198 = vunpack.c.l.b16 %v62
  %v199 = vunpack.c.l.b16 %v63
  %v200 = vunpack.c.l.b16 %v64
  %v201 = vunpack.c.l.b16 %v65
  %v202 = vunpack.c.l.b16 %v66
  %v203 = vunpack.c.l.b16 %v67
  %v204 = vunpack.c.l.b16 %v68
  %v205 = vunpack.c.l.b16 %v69
  %v206 = vunpack.c.l.b16 %v70
  %v207 = vunpack.c.l.b16 %v71
  %v208 = vunpack.c.l.b16 %v72
  %v209 = vunpack.c.l.b16 %v73
  %v210 = vunpack.c.l.b16 %v74
  %v211 = vunpack.c.l.b16 %v75
  %v212 = vunpack.c.l.b16 %v76
  %v213 = vunpack.c.l.b16 %v77
  %v214 = vunpack.c.l.b16 %v78
  %v215 = vunpack.c.l.b16 %v79
  %v216 = vunpack.c.l.b16 %v80
  %v217 = vunpack.c.l.b16 %v81
  %v218 = vpack.c.b16 %v155, %v154
  %v219 = vpack.c.b16 %v157, %v156
  %v220 = vpack.c.b16 %v159, %v158
  %v221 = vpack.c.b16 %v161, %v160
  %v222 = vpack.c.b16 %v163, %v162
  %v223 = vpack.c.b16 %v165, %v164
  %v224 = vpack.c.b16 %v167, %v166
  %v225 = vpack.c.b16 %v169, %v168
  %v226 = vpack.c.b16 %v171, %v170
  %v227 = vpack.c.b16 %v173, %v172
  %v228 = vpack.c.b16 %v175, %v174
  %v229 = vpack.c.b16 %v177, %v176
  %v230 = vpack.c.b16 %v179, %v178
  %v231 = vpack.c.b16 %v181, %v180
  %v232 = vpack.c.b16 %v183, %v182
  %v233 = vpack.c.b16 %v185, %v184
  %v234 = vpack.c.b16 %v187, %v186
  %v235 = vpack.c.b16 %v189, %v188
  %v236 = vpack.c.b16 %v191, %v190
  %v237 = vpack.c.b16 %v193, %v192
  %v238 = vpack.c.b16 %v195, %v194
  %v239 = vpack.c.b16 %v197, %v196
  %v240 = vpack.c.b16 %v199, %v198
  %v241 = vpack.c.b16 %v201, %v200
  %v242 = vpack.c.b16 %v203, %v202
  %v243 = vpack.c.b16 %v205, %v204
  %v244 = vpack.c.b16 %v207, %v206
  %v245 = vpack.c.b16 %v209, %v208
  %v246 = vpack.c.b16 %v211, %v210
  %v247 = vpack.c.b16 %v213, %v212
  %v248 = vpack.c.b16 %v215, %v214
  %v249 = vpack.c.b16 %v217, %v216
  %vm250 = vcmask 31744
  %v252 = vsel %vm250, %v218, 0
  %v255 = vsel %vm250, %v219, 0
  %v258 = vsel %vm250, %v220, 0
  %v261 = vsel %vm250, %v221, 0
  %v264 = vsel %vm250, %v222, 0
  %v267 = vsel %vm250, %v223, 0
  %v270 = vsel %vm250, %v224, 0
  %v273 = vsel %vm250, %v225, 0
  %v276 = vsel %vm250, %v226, 0
  %v279 = vsel %vm250, %v227, 0
  %v282 = vsel %vm250, %v228, 0
  %v285 = vsel %vm250, %v229, 0
  %v288 = vsel %vm250, %v230, 0
  %v291 = vsel %vm250, %v231, 0
  %v294 = vsel %vm250, %v232, 0
  %v297 = vsel %vm250, %v233, 0
  %v300 = vsel %vm250, %v234, 0
  %v303 = vsel %vm250, %v235, 0
  %v306 = vsel %vm250, %v236, 0
  %v309 = vsel %vm250, %v237, 0
  %v312 = vsel %vm250, %v238, 0
  %v315 = vsel %vm250, %v239, 0
  %v318 = vsel %vm250, %v240, 0
  %v321 = vsel %vm250, %v241, 0
  %v324 = vsel %vm250, %v242, 0
  %v327 = vsel %vm250, %v243, 0
  %v330 = vsel %vm250, %v244, 0
  %v333 = vsel %vm250, %v245, 0
  %v336 = vsel %vm250, %v246, 0
  %v339 = vsel %vm250, %v247, 0
  %v342 = vsel %vm250, %v248, 0
  %v345 = vsel %vm250, %v249, 0
  %vm347 = vcmask 1041408
  %v349 = vsel %vm347, %v82, 0
  %351 = vmatprep.subr.bf16.mxu0 0
  %352 = vmatpush1.bf16.msra.mxu0 %v349
  %353 = vmatprep.subr.bf16.mxu0 0
  %354 = vmatpush1.bf16.msra.mxu0 0
  %355 = vmatprep.subr.bf16.mxu0 0
  %356 = vmatpush1.bf16.msra.mxu0 0
  %357 = vmatprep.subr.bf16.mxu0 0
  %358 = vmatpush1.bf16.msra.mxu0 0
  %359 = vmatprep.subr.bf16.mxu0 0
  %360 = vmatpush1.bf16.msra.mxu0 0
  %361 = vmatprep.subr.bf16.mxu0 0
  %362 = vmatpush1.bf16.msra.mxu0 0
  %363 = vmatprep.subr.bf16.mxu0 0
  %364 = vmatpush1.bf16.msra.mxu0 0
  %365 = vmatprep.subr.bf16.mxu0 0
  %366 = vmatpush1.bf16.msra.mxu0 0
  %367 = vmatprep.subr.bf16.mxu0 0
  %368 = vmatpush1.bf16.msra.mxu0 0
  %369 = vmatprep.subr.bf16.mxu0 0
  %370 = vmatpush1.bf16.msra.mxu0 0
  %371 = vmatprep.subr.bf16.mxu0 0
  %372 = vmatpush1.bf16.msra.mxu0 0
  %373 = vmatprep.subr.bf16.mxu0 0
  %374 = vmatpush1.bf16.msra.mxu0 0
  %375 = vmatprep.subr.bf16.mxu0 0
  %376 = vmatpush1.bf16.msra.mxu0 0
  %377 = vmatprep.subr.bf16.mxu0 0
  %378 = vmatpush1.bf16.msra.mxu0 0
  %379 = vmatprep.subr.bf16.mxu0 0
  %380 = vmatpush1.bf16.msra.mxu0 0
  %381 = vmatprep.subr.bf16.mxu0 0
  %382 = vmatpush1.bf16.msra.mxu0 0
  %383 = vmatprep.mubr.bf16.mxu0 0
  %384 = vmatmul.mubr.bf16.gmra.mrb[0].mxu0 %v252
  %v385 = vpop.f32.mrb[0].mxu0
  %v386 = vadd.f32 %v88, %v385
  %v387 = vpop.f32.mrb[0].mxu0
  %v388 = vpop.f32.mrb[0].mxu0
  %v389 = vadd.f32 %v88, %v388
  %v390 = vpop.f32.mrb[0].mxu0
  %391 = vmatprep.mubr.bf16.mxu0 0
  %392 = vmatmul.mubr.bf16.gmra.mrb[0].mxu0 %v255
  %v393 = vpop.f32.mrb[0].mxu0
  %v394 = vadd.f32 %v88, %v393
  %v395 = vpop.f32.mrb[0].mxu0
  %v396 = vpop.f32.mrb[0].mxu0
  %v397 = vadd.f32 %v88, %v396
  %v398 = vpop.f32.mrb[0].mxu0
  %399 = vmatprep.mubr.bf16.mxu0 0
  %400 = vmatmul.mubr.bf16.gmra.mrb[0].mxu0 %v258
  %v401 = vpop.f32.mrb[0].mxu0
  %v402 = vadd.f32 %v88, %v401
  %v403 = vpop.f32.mrb[0].mxu0
  %v404 = vpop.f32.mrb[0].mxu0
  %v405 = vadd.f32 %v88, %v404
  %v406 = vpop.f32.mrb[0].mxu0
  %407 = vmatprep.mubr.bf16.mxu0 0
  %408 = vmatmul.mubr.bf16.gmra.mrb[0].mxu0 %v261
  %v409 = vpop.f32.mrb[0].mxu0
  %v410 = vadd.f32 %v88, %v409
  %v411 = vpop.f32.mrb[0].mxu0
  %v412 = vpop.f32.mrb[0].mxu0
  %v413 = vadd.f32 %v88, %v412
  %v414 = vpop.f32.mrb[0].mxu0
  %415 = vmatprep.mubr.bf16.mxu0 0
  %416 = vmatmul.mubr.bf16.gmra.mrb[0].mxu0 %v264
  %v417 = vpop.f32.mrb[0].mxu0
  %v418 = vadd.f32 %v88, %v417
  %v419 = vpop.f32.mrb[0].mxu0
  %v420 = vpop.f32.mrb[0].mxu0
  %v421 = vadd.f32 %v88, %v420
  %v422 = vpop.f32.mrb[0].mxu0
  %423 = vmatprep.mubr.bf16.mxu0 0
  %424 = vmatmul.mubr.bf16.gmra.mrb[0].mxu0 %v267
  %v425 = vpop.f32.mrb[0].mxu0
  %v426 = vadd.f32 %v88, %v425
  %v427 = vpop.f32.mrb[0].mxu0
  %v428 = vpop.f32.mrb[0].mxu0
  %v429 = vadd.f32 %v88, %v428
  %v430 = vpop.f32.mrb[0].mxu0
  %431 = vmatprep.mubr.bf16.mxu0 0
  %432 = vmatmul.mubr.bf16.gmra.mrb[0].mxu0 %v270
  %v433 = vpop.f32.mrb[0].mxu0
  %v434 = vadd.f32 %v88, %v433
  %v435 = vpop.f32.mrb[0].mxu0
  %v436 = vpop.f32.mrb[0].mxu0
  %v437 = vadd.f32 %v88, %v436
  %v438 = vpop.f32.mrb[0].mxu0
  %439 = vmatprep.mubr.bf16.mxu0 0
  %440 = vmatmul.mubr.bf16.gmra.mrb[0].mxu0 %v273
  %v441 = vpop.f32.mrb[0].mxu0
  %v442 = vadd.f32 %v88, %v441
  %v443 = vpop.f32.mrb[0].mxu0
  %v444 = vpop.f32.mrb[0].mxu0
  %v445 = vadd.f32 %v88, %v444
  %v446 = vpop.f32.mrb[0].mxu0
  %447 = vmatprep.mubr.bf16.mxu0 0
  %448 = vmatmul.mubr.bf16.gmra.mrb[0].mxu0 %v276
  %v449 = vpop.f32.mrb[0].mxu0
  %v450 = vadd.f32 %v88, %v449
  %v451 = vpop.f32.mrb[0].mxu0
  %v452 = vpop.f32.mrb[0].mxu0
  %v453 = vadd.f32 %v88, %v452
  %v454 = vpop.f32.mrb[0].mxu0
  %455 = vmatprep.mubr.bf16.mxu0 0
  %456 = vmatmul.mubr.bf16.gmra.mrb[0].mxu0 %v279
  %v457 = vpop.f32.mrb[0].mxu0
  %v458 = vadd.f32 %v88, %v457
  %v459 = vpop.f32.mrb[0].mxu0
  %v460 = vpop.f32.mrb[0].mxu0
  %v461 = vadd.f32 %v88, %v460
  %v462 = vpop.f32.mrb[0].mxu0
  %463 = vmatprep.mubr.bf16.mxu0 0
  %464 = vmatmul.mubr.bf16.gmra.mrb[0].mxu0 %v282
  %v465 = vpop.f32.mrb[0].mxu0
  %v466 = vadd.f32 %v88, %v465
  %v467 = vpop.f32.mrb[0].mxu0
  %v468 = vpop.f32.mrb[0].mxu0
  %v469 = vadd.f32 %v88, %v468
  %v470 = vpop.f32.mrb[0].mxu0
  %471 = vmatprep.mubr.bf16.mxu0 0
  %472 = vmatmul.mubr.bf16.gmra.mrb[0].mxu0 %v285
  %v473 = vpop.f32.mrb[0].mxu0
  %v474 = vadd.f32 %v88, %v473
  %v475 = vpop.f32.mrb[0].mxu0
  %v476 = vpop.f32.mrb[0].mxu0
  %v477 = vadd.f32 %v88, %v476
  %v478 = vpop.f32.mrb[0].mxu0
  %479 = vmatprep.mubr.bf16.mxu0 0
  %480 = vmatmul.mubr.bf16.gmra.mrb[0].mxu0 %v288
  %v481 = vpop.f32.mrb[0].mxu0
  %v482 = vadd.f32 %v88, %v481
  %v483 = vpop.f32.mrb[0].mxu0
  %v484 = vpop.f32.mrb[0].mxu0
  %v485 = vadd.f32 %v88, %v484
  %v486 = vpop.f32.mrb[0].mxu0
  %487 = vmatprep.mubr.bf16.mxu0 0
  %488 = vmatmul.mubr.bf16.gmra.mrb[0].mxu0 %v291
  %v489 = vpop.f32.mrb[0].mxu0
  %v490 = vadd.f32 %v88, %v489
  %v491 = vpop.f32.mrb[0].mxu0
  %v492 = vpop.f32.mrb[0].mxu0
  %v493 = vadd.f32 %v88, %v492
  %v494 = vpop.f32.mrb[0].mxu0
  %495 = vmatprep.mubr.bf16.mxu0 0
  %496 = vmatmul.mubr.bf16.gmra.mrb[0].mxu0 %v294
  %v497 = vpop.f32.mrb[0].mxu0
  %v498 = vadd.f32 %v88, %v497
  %v499 = vpop.f32.mrb[0].mxu0
  %v500 = vpop.f32.mrb[0].mxu0
  %v501 = vadd.f32 %v88, %v500
  %v502 = vpop.f32.mrb[0].mxu0
  %503 = vmatprep.mubr.bf16.mxu0 0
  %504 = vmatmul.mubr.bf16.gmra.mrb[0].mxu0 %v297
  %v505 = vpop.f32.mrb[0].mxu0
  %v506 = vadd.f32 %v88, %v505
  %v507 = vpop.f32.mrb[0].mxu0
  %v508 = vpop.f32.mrb[0].mxu0
  %v509 = vadd.f32 %v88, %v508
  %v510 = vpop.f32.mrb[0].mxu0
  %511 = vmatprep.mubr.bf16.mxu0 0
  %512 = vmatmul.mubr.bf16.gmra.mrb[0].mxu0 %v300
  %v513 = vpop.f32.mrb[0].mxu0
  %v514 = vadd.f32 %v88, %v513
  %v515 = vpop.f32.mrb[0].mxu0
  %v516 = vpop.f32.mrb[0].mxu0
  %v517 = vadd.f32 %v88, %v516
  %v518 = vpop.f32.mrb[0].mxu0
  %519 = vmatprep.mubr.bf16.mxu0 0
  %520 = vmatmul.mubr.bf16.gmra.mrb[0].mxu0 %v303
  %v521 = vpop.f32.mrb[0].mxu0
  %v522 = vadd.f32 %v88, %v521
  %v523 = vpop.f32.mrb[0].mxu0
  %v524 = vpop.f32.mrb[0].mxu0
  %v525 = vadd.f32 %v88, %v524
  %v526 = vpop.f32.mrb[0].mxu0
  %527 = vmatprep.mubr.bf16.mxu0 0
  %528 = vmatmul.mubr.bf16.gmra.mrb[0].mxu0 %v306
  %v529 = vpop.f32.mrb[0].mxu0
  %v530 = vadd.f32 %v88, %v529
  %v531 = vpop.f32.mrb[0].mxu0
  %v532 = vpop.f32.mrb[0].mxu0
  %v533 = vadd.f32 %v88, %v532
  %v534 = vpop.f32.mrb[0].mxu0
  %535 = vmatprep.mubr.bf16.mxu0 0
  %536 = vmatmul.mubr.bf16.gmra.mrb[0].mxu0 %v309
  %v537 = vpop.f32.mrb[0].mxu0
  %v538 = vadd.f32 %v88, %v537
  %v539 = vpop.f32.mrb[0].mxu0
  %v540 = vpop.f32.mrb[0].mxu0
  %v541 = vadd.f32 %v88, %v540
  %v542 = vpop.f32.mrb[0].mxu0
  %543 = vmatprep.mubr.bf16.mxu0 0
  %544 = vmatmul.mubr.bf16.gmra.mrb[0].mxu0 %v312
  %v545 = vpop.f32.mrb[0].mxu0
  %v546 = vadd.f32 %v88, %v545
  %v547 = vpop.f32.mrb[0].mxu0
  %v548 = vpop.f32.mrb[0].mxu0
  %v549 = vadd.f32 %v88, %v548
  %v550 = vpop.f32.mrb[0].mxu0
  %551 = vmatprep.mubr.bf16.mxu0 0
  %552 = vmatmul.mubr.bf16.gmra.mrb[0].mxu0 %v315
  %v553 = vpop.f32.mrb[0].mxu0
  %v554 = vadd.f32 %v88, %v553
  %v555 = vpop.f32.mrb[0].mxu0
  %v556 = vpop.f32.mrb[0].mxu0
  %v557 = vadd.f32 %v88, %v556
  %v558 = vpop.f32.mrb[0].mxu0
  %559 = vmatprep.mubr.bf16.mxu0 0
  %560 = vmatmul.mubr.bf16.gmra.mrb[0].mxu0 %v318
  %v561 = vpop.f32.mrb[0].mxu0
  %v562 = vadd.f32 %v88, %v561
  %v563 = vpop.f32.mrb[0].mxu0
  %v564 = vpop.f32.mrb[0].mxu0
  %v565 = vadd.f32 %v88, %v564
  %v566 = vpop.f32.mrb[0].mxu0
  %567 = vmatprep.mubr.bf16.mxu0 0
  %568 = vmatmul.mubr.bf16.gmra.mrb[0].mxu0 %v321
  %v569 = vpop.f32.mrb[0].mxu0
  %v570 = vadd.f32 %v88, %v569
  %v571 = vpop.f32.mrb[0].mxu0
  %v572 = vpop.f32.mrb[0].mxu0
  %v573 = vadd.f32 %v88, %v572
  %v574 = vpop.f32.mrb[0].mxu0
  %575 = vmatprep.mubr.bf16.mxu0 0
  %576 = vmatmul.mubr.bf16.gmra.mrb[0].mxu0 %v324
  %v577 = vpop.f32.mrb[0].mxu0
  %v578 = vadd.f32 %v88, %v577
  %v579 = vpop.f32.mrb[0].mxu0
  %v580 = vpop.f32.mrb[0].mxu0
  %v581 = vadd.f32 %v88, %v580
  %v582 = vpop.f32.mrb[0].mxu0
  %583 = vmatprep.mubr.bf16.mxu0 0
  %584 = vmatmul.mubr.bf16.gmra.mrb[0].mxu0 %v327
  %v585 = vpop.f32.mrb[0].mxu0
  %v586 = vadd.f32 %v88, %v585
  %v587 = vpop.f32.mrb[0].mxu0
  %v588 = vpop.f32.mrb[0].mxu0
  %v589 = vadd.f32 %v88, %v588
  %v590 = vpop.f32.mrb[0].mxu0
  %591 = vmatprep.mubr.bf16.mxu0 0
  %592 = vmatmul.mubr.bf16.gmra.mrb[0].mxu0 %v330
  %v593 = vpop.f32.mrb[0].mxu0
  %v594 = vadd.f32 %v88, %v593
  %v595 = vpop.f32.mrb[0].mxu0
  %v596 = vpop.f32.mrb[0].mxu0
  %v597 = vadd.f32 %v88, %v596
  %v598 = vpop.f32.mrb[0].mxu0
  %599 = vmatprep.mubr.bf16.mxu0 0
  %600 = vmatmul.mubr.bf16.gmra.mrb[0].mxu0 %v333
  %v601 = vpop.f32.mrb[0].mxu0
  %v602 = vadd.f32 %v88, %v601
  %v603 = vpop.f32.mrb[0].mxu0
  %v604 = vpop.f32.mrb[0].mxu0
  %v605 = vadd.f32 %v88, %v604
  %v606 = vpop.f32.mrb[0].mxu0
  %607 = vmatprep.mubr.bf16.mxu0 0
  %608 = vmatmul.mubr.bf16.gmra.mrb[0].mxu0 %v336
  %v609 = vpop.f32.mrb[0].mxu0
  %v610 = vadd.f32 %v88, %v609
  %v611 = vpop.f32.mrb[0].mxu0
  %v612 = vpop.f32.mrb[0].mxu0
  %v613 = vadd.f32 %v88, %v612
  %v614 = vpop.f32.mrb[0].mxu0
  %615 = vmatprep.mubr.bf16.mxu0 0
  %616 = vmatmul.mubr.bf16.gmra.mrb[0].mxu0 %v339
  %v617 = vpop.f32.mrb[0].mxu0
  %v618 = vadd.f32 %v88, %v617
  %v619 = vpop.f32.mrb[0].mxu0
  %v620 = vpop.f32.mrb[0].mxu0
  %v621 = vadd.f32 %v88, %v620
  %v622 = vpop.f32.mrb[0].mxu0
  %623 = vmatprep.mubr.bf16.mxu0 0
  %624 = vmatmul.mubr.bf16.gmra.mrb[0].mxu0 %v342
  %v625 = vpop.f32.mrb[0].mxu0
  %v626 = vadd.f32 %v88, %v625
  %v627 = vpop.f32.mrb[0].mxu0
  %v628 = vpop.f32.mrb[0].mxu0
  %v629 = vadd.f32 %v88, %v628
  %v630 = vpop.f32.mrb[0].mxu0
  %631 = vmatprep.mubr.bf16.mxu0 0
  %632 = vmatmul.mubr.bf16.gmra.mrb[0].mxu0 %v345
  %v633 = vpop.f32.mrb[0].mxu0
  %v634 = vadd.f32 %v88, %v633
  %v635 = vpop.f32.mrb[0].mxu0
  %v636 = vpop.f32.mrb[0].mxu0
  %v637 = vadd.f32 %v88, %v636
  %v638 = vpop.f32.mrb[0].mxu0
  %639 = vdwg.mxu0
  %v640 = vmax.f32 %v386, 0.0
  %v641 = vmax.f32 %v389, 0.0
  %v642 = vmax.f32 %v394, 0.0
  %v643 = vmax.f32 %v397, 0.0
  %v644 = vmax.f32 %v402, 0.0
  %v645 = vmax.f32 %v405, 0.0
  %v646 = vmax.f32 %v410, 0.0
  %v647 = vmax.f32 %v413, 0.0
  %v648 = vmax.f32 %v418, 0.0
  %v649 = vmax.f32 %v421, 0.0
  %v650 = vmax.f32 %v426, 0.0
  %v651 = vmax.f32 %v429, 0.0
  %v652 = vmax.f32 %v434, 0.0
  %v653 = vmax.f32 %v437, 0.0
  %v654 = vmax.f32 %v442, 0.0
  %v655 = vmax.f32 %v445, 0.0
  %v656 = vmax.f32 %v450, 0.0
  %v657 = vmax.f32 %v453, 0.0
  %v658 = vmax.f32 %v458, 0.0
  %v659 = vmax.f32 %v461, 0.0
  %v660 = vmax.f32 %v466, 0.0
  %v661 = vmax.f32 %v469, 0.0
  %v662 = vmax.f32 %v474, 0.0
  %v663 = vmax.f32 %v477, 0.0
  %v664 = vmax.f32 %v482, 0.0
  %v665 = vmax.f32 %v485, 0.0
  %v666 = vmax.f32 %v490, 0.0
  %v667 = vmax.f32 %v493, 0.0
  %v668 = vmax.f32 %v498, 0.0
  %v669 = vmax.f32 %v501, 0.0
  %v670 = vmax.f32 %v506, 0.0
  %v671 = vmax.f32 %v509, 0.0
  %v672 = vmax.f32 %v514, 0.0
  %v673 = vmax.f32 %v517, 0.0
  %v674 = vmax.f32 %v522, 0.0
  %v675 = vmax.f32 %v525, 0.0
  %v676 = vmax.f32 %v530, 0.0
  %v677 = vmax.f32 %v533, 0.0
  %v678 = vmax.f32 %v538, 0.0
  %v679 = vmax.f32 %v541, 0.0
  %v680 = vmax.f32 %v546, 0.0
  %v681 = vmax.f32 %v549, 0.0
  %v682 = vmax.f32 %v554, 0.0
  %v683 = vmax.f32 %v557, 0.0
  %v684 = vmax.f32 %v562, 0.0
  %v685 = vmax.f32 %v565, 0.0
  %v686 = vmax.f32 %v570, 0.0
  %v687 = vmax.f32 %v573, 0.0
  %v688 = vmax.f32 %v578, 0.0
  %v689 = vmax.f32 %v581, 0.0
  %v690 = vmax.f32 %v586, 0.0
  %v691 = vmax.f32 %v589, 0.0
  %v692 = vmax.f32 %v594, 0.0
  %v693 = vmax.f32 %v597, 0.0
  %v694 = vmax.f32 %v602, 0.0
  %v695 = vmax.f32 %v605, 0.0
  %v696 = vmax.f32 %v610, 0.0
  %v697 = vmax.f32 %v613, 0.0
  %v698 = vmax.f32 %v618, 0.0
  %v699 = vmax.f32 %v621, 0.0
  %v700 = vmax.f32 %v626, 0.0
  %v701 = vmax.f32 %v629, 0.0
  %v702 = vmax.f32 %v634, 0.0
  %v703 = vmax.f32 %v637, 0.0
  %v704 = vld [vmem:[%s1] sm:$0xff]
  %v705 = vld [vmem:[%s1 + $0x8] sm:$0xff]
  %v706 = vld [vmem:[%s1 + $0x10] sm:$0xff]
  %v707 = vld [vmem:[%s1 + $0x18] sm:$0xff]
  %v708 = vld [vmem:[%s1 + $0x20] sm:$0xff]
  %v709 = vld [vmem:[%s1 + $0x28] sm:$0xff]
  %v710 = vld [vmem:[%s1 + $0x30] sm:$0xff]
  %v711 = vld [vmem:[%s1 + $0x38] sm:$0xff]
  %v712 = vcombine.high %v704, %v704
  %v714 = vunpack.c.l.s4 1966171168
  %v715 = vunpack.c.0.s8 %v714
  %v716 = vlaneseq
  %v717 = vshrl.u32 %v716, 7
  %v718 = vsub.s32 %v715, %v717
  %v719 = vrot.slane %v704, %v718
  %v721 = vunpack.c.l.s4 1966171168
  %v722 = vunpack.c.0.s8 %v721
  %v723 = vlaneseq
  %v724 = vshrl.u32 %v723, 7
  %v725 = vsub.s32 %v722, %v724
  %v726 = vrot.slane %v712, %v725
  %v727 = vcombine.high %v719, %v719
  %v728 = vcombine.high %v726, %v726
  %v730 = vunpack.c.l.s4 1966171168
  %v731 = vunpack.c.0.s8 %v730
  %v732 = vlaneseq
  %v733 = vshrl.u32 %v732, 7
  %v734 = vsub.s32 %v731, %v733
  %v735 = vrot.slane %v719, %v734
  %v737 = vunpack.c.l.s4 1966171168
  %v738 = vunpack.c.0.s8 %v737
  %v739 = vlaneseq
  %v740 = vshrl.u32 %v739, 7
  %v741 = vsub.s32 %v738, %v740
  %v742 = vrot.slane %v726, %v741
  %v744 = vunpack.c.l.s4 1966171168
  %v745 = vunpack.c.0.s8 %v744
  %v746 = vlaneseq
  %v747 = vshrl.u32 %v746, 7
  %v748 = vsub.s32 %v745, %v747
  %v749 = vrot.slane %v727, %v748
  %v751 = vunpack.c.l.s4 1966171168
  %v752 = vunpack.c.0.s8 %v751
  %v753 = vlaneseq
  %v754 = vshrl.u32 %v753, 7
  %v755 = vsub.s32 %v752, %v754
  %v756 = vrot.slane %v728, %v755
  %v757 = vcombine.high %v735, %v735
  %v758 = vcombine.high %v742, %v742
  %v759 = vcombine.high %v749, %v749
  %v760 = vcombine.high %v756, %v756
  %v761 = vcombine.high %v705, %v705
  %v763 = vunpack.c.l.s4 1966171168
  %v764 = vunpack.c.0.s8 %v763
  %v765 = vlaneseq
  %v766 = vshrl.u32 %v765, 7
  %v767 = vsub.s32 %v764, %v766
  %v768 = vrot.slane %v705, %v767
  %v770 = vunpack.c.l.s4 1966171168
  %v771 = vunpack.c.0.s8 %v770
  %v772 = vlaneseq
  %v773 = vshrl.u32 %v772, 7
  %v774 = vsub.s32 %v771, %v773
  %v775 = vrot.slane %v761, %v774
  %v776 = vcombine.high %v768, %v768
  %v777 = vcombine.high %v775, %v775
  %v779 = vunpack.c.l.s4 1966171168
  %v780 = vunpack.c.0.s8 %v779
  %v781 = vlaneseq
  %v782 = vshrl.u32 %v781, 7
  %v783 = vsub.s32 %v780, %v782
  %v784 = vrot.slane %v768, %v783
  %v786 = vunpack.c.l.s4 1966171168
  %v787 = vunpack.c.0.s8 %v786
  %v788 = vlaneseq
  %v789 = vshrl.u32 %v788, 7
  %v790 = vsub.s32 %v787, %v789
  %v791 = vrot.slane %v775, %v790
  %v793 = vunpack.c.l.s4 1966171168
  %v794 = vunpack.c.0.s8 %v793
  %v795 = vlaneseq
  %v796 = vshrl.u32 %v795, 7
  %v797 = vsub.s32 %v794, %v796
  %v798 = vrot.slane %v776, %v797
  %v800 = vunpack.c.l.s4 1966171168
  %v801 = vunpack.c.0.s8 %v800
  %v802 = vlaneseq
  %v803 = vshrl.u32 %v802, 7
  %v804 = vsub.s32 %v801, %v803
  %v805 = vrot.slane %v777, %v804
  %v806 = vcombine.high %v784, %v784
  %v807 = vcombine.high %v791, %v791
  %v808 = vcombine.high %v798, %v798
  %v809 = vcombine.high %v805, %v805
  %v810 = vcombine.high %v706, %v706
  %v812 = vunpack.c.l.s4 1966171168
  %v813 = vunpack.c.0.s8 %v812
  %v814 = vlaneseq
  %v815 = vshrl.u32 %v814, 7
  %v816 = vsub.s32 %v813, %v815
  %v817 = vrot.slane %v706, %v816
  %v819 = vunpack.c.l.s4 1966171168
  %v820 = vunpack.c.0.s8 %v819
  %v821 = vlaneseq
  %v822 = vshrl.u32 %v821, 7
  %v823 = vsub.s32 %v820, %v822
  %v824 = vrot.slane %v810, %v823
  %v825 = vcombine.high %v817, %v817
  %v826 = vcombine.high %v824, %v824
  %v828 = vunpack.c.l.s4 1966171168
  %v829 = vunpack.c.0.s8 %v828
  %v830 = vlaneseq
  %v831 = vshrl.u32 %v830, 7
  %v832 = vsub.s32 %v829, %v831
  %v833 = vrot.slane %v817, %v832
  %v835 = vunpack.c.l.s4 1966171168
  %v836 = vunpack.c.0.s8 %v835
  %v837 = vlaneseq
  %v838 = vshrl.u32 %v837, 7
  %v839 = vsub.s32 %v836, %v838
  %v840 = vrot.slane %v824, %v839
  %v842 = vunpack.c.l.s4 1966171168
  %v843 = vunpack.c.0.s8 %v842
  %v844 = vlaneseq
  %v845 = vshrl.u32 %v844, 7
  %v846 = vsub.s32 %v843, %v845
  %v847 = vrot.slane %v825, %v846
  %v849 = vunpack.c.l.s4 1966171168
  %v850 = vunpack.c.0.s8 %v849
  %v851 = vlaneseq
  %v852 = vshrl.u32 %v851, 7
  %v853 = vsub.s32 %v850, %v852
  %v854 = vrot.slane %v826, %v853
  %v855 = vcombine.high %v833, %v833
  %v856 = vcombine.high %v840, %v840
  %v857 = vcombine.high %v847, %v847
  %v858 = vcombine.high %v854, %v854
  %v859 = vcombine.high %v707, %v707
  %v861 = vunpack.c.l.s4 1966171168
  %v862 = vunpack.c.0.s8 %v861
  %v863 = vlaneseq
  %v864 = vshrl.u32 %v863, 7
  %v865 = vsub.s32 %v862, %v864
  %v866 = vrot.slane %v707, %v865
  %v868 = vunpack.c.l.s4 1966171168
  %v869 = vunpack.c.0.s8 %v868
  %v870 = vlaneseq
  %v871 = vshrl.u32 %v870, 7
  %v872 = vsub.s32 %v869, %v871
  %v873 = vrot.slane %v859, %v872
  %v874 = vcombine.high %v866, %v866
  %v875 = vcombine.high %v873, %v873
  %v877 = vunpack.c.l.s4 1966171168
  %v878 = vunpack.c.0.s8 %v877
  %v879 = vlaneseq
  %v880 = vshrl.u32 %v879, 7
  %v881 = vsub.s32 %v878, %v880
  %v882 = vrot.slane %v866, %v881
  %v884 = vunpack.c.l.s4 1966171168
  %v885 = vunpack.c.0.s8 %v884
  %v886 = vlaneseq
  %v887 = vshrl.u32 %v886, 7
  %v888 = vsub.s32 %v885, %v887
  %v889 = vrot.slane %v873, %v888
  %v891 = vunpack.c.l.s4 1966171168
  %v892 = vunpack.c.0.s8 %v891
  %v893 = vlaneseq
  %v894 = vshrl.u32 %v893, 7
  %v895 = vsub.s32 %v892, %v894
  %v896 = vrot.slane %v874, %v895
  %v898 = vunpack.c.l.s4 1966171168
  %v899 = vunpack.c.0.s8 %v898
  %v900 = vlaneseq
  %v901 = vshrl.u32 %v900, 7
  %v902 = vsub.s32 %v899, %v901
  %v903 = vrot.slane %v875, %v902
  %v904 = vcombine.high %v882, %v882
  %v905 = vcombine.high %v889, %v889
  %v906 = vcombine.high %v896, %v896
  %v907 = vcombine.high %v903, %v903
  %v908 = vcombine.high %v708, %v708
  %v910 = vunpack.c.l.s4 1966171168
  %v911 = vunpack.c.0.s8 %v910
  %v912 = vlaneseq
  %v913 = vshrl.u32 %v912, 7
  %v914 = vsub.s32 %v911, %v913
  %v915 = vrot.slane %v708, %v914
  %v917 = vunpack.c.l.s4 1966171168
  %v918 = vunpack.c.0.s8 %v917
  %v919 = vlaneseq
  %v920 = vshrl.u32 %v919, 7
  %v921 = vsub.s32 %v918, %v920
  %v922 = vrot.slane %v908, %v921
  %v923 = vcombine.high %v915, %v915
  %v924 = vcombine.high %v922, %v922
  %v926 = vunpack.c.l.s4 1966171168
  %v927 = vunpack.c.0.s8 %v926
  %v928 = vlaneseq
  %v929 = vshrl.u32 %v928, 7
  %v930 = vsub.s32 %v927, %v929
  %v931 = vrot.slane %v915, %v930
  %v933 = vunpack.c.l.s4 1966171168
  %v934 = vunpack.c.0.s8 %v933
  %v935 = vlaneseq
  %v936 = vshrl.u32 %v935, 7
  %v937 = vsub.s32 %v934, %v936
  %v938 = vrot.slane %v922, %v937
  %v940 = vunpack.c.l.s4 1966171168
  %v941 = vunpack.c.0.s8 %v940
  %v942 = vlaneseq
  %v943 = vshrl.u32 %v942, 7
  %v944 = vsub.s32 %v941, %v943
  %v945 = vrot.slane %v923, %v944
  %v947 = vunpack.c.l.s4 1966171168
  %v948 = vunpack.c.0.s8 %v947
  %v949 = vlaneseq
  %v950 = vshrl.u32 %v949, 7
  %v951 = vsub.s32 %v948, %v950
  %v952 = vrot.slane %v924, %v951
  %v953 = vcombine.high %v931, %v931
  %v954 = vcombine.high %v938, %v938
  %v955 = vcombine.high %v945, %v945
  %v956 = vcombine.high %v952, %v952
  %v957 = vcombine.high %v709, %v709
  %v959 = vunpack.c.l.s4 1966171168
  %v960 = vunpack.c.0.s8 %v959
  %v961 = vlaneseq
  %v962 = vshrl.u32 %v961, 7
  %v963 = vsub.s32 %v960, %v962
  %v964 = vrot.slane %v709, %v963
  %v966 = vunpack.c.l.s4 1966171168
  %v967 = vunpack.c.0.s8 %v966
  %v968 = vlaneseq
  %v969 = vshrl.u32 %v968, 7
  %v970 = vsub.s32 %v967, %v969
  %v971 = vrot.slane %v957, %v970
  %v972 = vcombine.high %v964, %v964
  %v973 = vcombine.high %v971, %v971
  %v975 = vunpack.c.l.s4 1966171168
  %v976 = vunpack.c.0.s8 %v975
  %v977 = vlaneseq
  %v978 = vshrl.u32 %v977, 7
  %v979 = vsub.s32 %v976, %v978
  %v980 = vrot.slane %v964, %v979
  %v982 = vunpack.c.l.s4 1966171168
  %v983 = vunpack.c.0.s8 %v982
  %v984 = vlaneseq
  %v985 = vshrl.u32 %v984, 7
  %v986 = vsub.s32 %v983, %v985
  %v987 = vrot.slane %v971, %v986
  %v989 = vunpack.c.l.s4 1966171168
  %v990 = vunpack.c.0.s8 %v989
  %v991 = vlaneseq
  %v992 = vshrl.u32 %v991, 7
  %v993 = vsub.s32 %v990, %v992
  %v994 = vrot.slane %v972, %v993
  %v996 = vunpack.c.l.s4 1966171168
  %v997 = vunpack.c.0.s8 %v996
  %v998 = vlaneseq
  %v999 = vshrl.u32 %v998, 7
  %v1000 = vsub.s32 %v997, %v999
  %v1001 = vrot.slane %v973, %v1000
  %v1002 = vcombine.high %v980, %v980
  %v1003 = vcombine.high %v987, %v987
  %v1004 = vcombine.high %v994, %v994
  %v1005 = vcombine.high %v1001, %v1001
  %v1006 = vcombine.high %v710, %v710
  %v1008 = vunpack.c.l.s4 1966171168
  %v1009 = vunpack.c.0.s8 %v1008
  %v1010 = vlaneseq
  %v1011 = vshrl.u32 %v1010, 7
  %v1012 = vsub.s32 %v1009, %v1011
  %v1013 = vrot.slane %v710, %v1012
  %v1015 = vunpack.c.l.s4 1966171168
  %v1016 = vunpack.c.0.s8 %v1015
  %v1017 = vlaneseq
  %v1018 = vshrl.u32 %v1017, 7
  %v1019 = vsub.s32 %v1016, %v1018
  %v1020 = vrot.slane %v1006, %v1019
  %v1021 = vcombine.high %v1013, %v1013
  %v1022 = vcombine.high %v1020, %v1020
  %v1024 = vunpack.c.l.s4 1966171168
  %v1025 = vunpack.c.0.s8 %v1024
  %v1026 = vlaneseq
  %v1027 = vshrl.u32 %v1026, 7
  %v1028 = vsub.s32 %v1025, %v1027
  %v1029 = vrot.slane %v1013, %v1028
  %v1031 = vunpack.c.l.s4 1966171168
  %v1032 = vunpack.c.0.s8 %v1031
  %v1033 = vlaneseq
  %v1034 = vshrl.u32 %v1033, 7
  %v1035 = vsub.s32 %v1032, %v1034
  %v1036 = vrot.slane %v1020, %v1035
  %v1038 = vunpack.c.l.s4 1966171168
  %v1039 = vunpack.c.0.s8 %v1038
  %v1040 = vlaneseq
  %v1041 = vshrl.u32 %v1040, 7
  %v1042 = vsub.s32 %v1039, %v1041
  %v1043 = vrot.slane %v1021, %v1042
  %v1045 = vunpack.c.l.s4 1966171168
  %v1046 = vunpack.c.0.s8 %v1045
  %v1047 = vlaneseq
  %v1048 = vshrl.u32 %v1047, 7
  %v1049 = vsub.s32 %v1046, %v1048
  %v1050 = vrot.slane %v1022, %v1049
  %v1051 = vcombine.high %v1029, %v1029
  %v1052 = vcombine.high %v1036, %v1036
  %v1053 = vcombine.high %v1043, %v1043
  %v1054 = vcombine.high %v1050, %v1050
  %v1055 = vcombine.high %v711, %v711
  %v1057 = vunpack.c.l.s4 1966171168
  %v1058 = vunpack.c.0.s8 %v1057
  %v1059 = vlaneseq
  %v1060 = vshrl.u32 %v1059, 7
  %v1061 = vsub.s32 %v1058, %v1060
  %v1062 = vrot.slane %v711, %v1061
  %v1064 = vunpack.c.l.s4 1966171168
  %v1065 = vunpack.c.0.s8 %v1064
  %v1066 = vlaneseq
  %v1067 = vshrl.u32 %v1066, 7
  %v1068 = vsub.s32 %v1065, %v1067
  %v1069 = vrot.slane %v1055, %v1068
  %v1070 = vcombine.high %v1062, %v1062
  %v1071 = vcombine.high %v1069, %v1069
  %v1073 = vunpack.c.l.s4 1966171168
  %v1074 = vunpack.c.0.s8 %v1073
  %v1075 = vlaneseq
  %v1076 = vshrl.u32 %v1075, 7
  %v1077 = vsub.s32 %v1074, %v1076
  %v1078 = vrot.slane %v1062, %v1077
  %v1080 = vunpack.c.l.s4 1966171168
  %v1081 = vunpack.c.0.s8 %v1080
  %v1082 = vlaneseq
  %v1083 = vshrl.u32 %v1082, 7
  %v1084 = vsub.s32 %v1081, %v1083
  %v1085 = vrot.slane %v1069, %v1084
  %v1087 = vunpack.c.l.s4 1966171168
  %v1088 = vunpack.c.0.s8 %v1087
  %v1089 = vlaneseq
  %v1090 = vshrl.u32 %v1089, 7
  %v1091 = vsub.s32 %v1088, %v1090
  %v1092 = vrot.slane %v1070, %v1091
  %v1094 = vunpack.c.l.s4 1966171168
  %v1095 = vunpack.c.0.s8 %v1094
  %v1096 = vlaneseq
  %v1097 = vshrl.u32 %v1096, 7
  %v1098 = vsub.s32 %v1095, %v1097
  %v1099 = vrot.slane %v1071, %v1098
  %v1100 = vcombine.high %v1078, %v1078
  %v1101 = vcombine.high %v1085, %v1085
  %v1102 = vcombine.high %v1092, %v1092
  %v1103 = vcombine.high %v1099, %v1099
  %v1104 = vlaneseq
  %v1105 = vshrl.u32 %v1104, 7
  %v1106 = vlaneseq
  %v1107 = vshrl.u32 %v1106, 7
  %v1108 = vsub.s32 0, %v1107
  %v1109 = vrot.slane %v735, %v1108
  %v1110 = vlaneseq
  %v1111 = vshrl.u32 %v1110, 7
  %v1112 = vsub.s32 0, %v1111
  %v1113 = vrot.slane %v749, %v1112
  %v1114 = vlaneseq
  %v1115 = vshrl.u32 %v1114, 7
  %v1116 = vsub.s32 0, %v1115
  %v1117 = vrot.slane %v757, %v1116
  %v1118 = vlaneseq
  %v1119 = vshrl.u32 %v1118, 7
  %v1120 = vsub.s32 0, %v1119
  %v1121 = vrot.slane %v759, %v1120
  %v1122 = vlaneseq
  %v1123 = vshrl.u32 %v1122, 7
  %v1124 = vsub.s32 0, %v1123
  %v1125 = vrot.slane %v742, %v1124
  %v1126 = vlaneseq
  %v1127 = vshrl.u32 %v1126, 7
  %v1128 = vsub.s32 0, %v1127
  %v1129 = vrot.slane %v756, %v1128
  %v1130 = vlaneseq
  %v1131 = vshrl.u32 %v1130, 7
  %v1132 = vsub.s32 0, %v1131
  %v1133 = vrot.slane %v758, %v1132
  %v1134 = vlaneseq
  %v1135 = vshrl.u32 %v1134, 7
  %v1136 = vsub.s32 0, %v1135
  %v1137 = vrot.slane %v760, %v1136
  %v1138 = vlaneseq
  %v1139 = vshrl.u32 %v1138, 7
  %v1140 = vsub.s32 0, %v1139
  %v1141 = vrot.slane %v784, %v1140
  %v1142 = vlaneseq
  %v1143 = vshrl.u32 %v1142, 7
  %v1144 = vsub.s32 0, %v1143
  %v1145 = vrot.slane %v798, %v1144
  %v1146 = vlaneseq
  %v1147 = vshrl.u32 %v1146, 7
  %v1148 = vsub.s32 0, %v1147
  %v1149 = vrot.slane %v806, %v1148
  %v1150 = vlaneseq
  %v1151 = vshrl.u32 %v1150, 7
  %v1152 = vsub.s32 0, %v1151
  %v1153 = vrot.slane %v808, %v1152
  %v1154 = vlaneseq
  %v1155 = vshrl.u32 %v1154, 7
  %v1156 = vsub.s32 0, %v1155
  %v1157 = vrot.slane %v791, %v1156
  %v1158 = vlaneseq
  %v1159 = vshrl.u32 %v1158, 7
  %v1160 = vsub.s32 0, %v1159
  %v1161 = vrot.slane %v805, %v1160
  %v1162 = vlaneseq
  %v1163 = vshrl.u32 %v1162, 7
  %v1164 = vsub.s32 0, %v1163
  %v1165 = vrot.slane %v807, %v1164
  %v1166 = vlaneseq
  %v1167 = vshrl.u32 %v1166, 7
  %v1168 = vsub.s32 0, %v1167
  %v1169 = vrot.slane %v809, %v1168
  %v1170 = vlaneseq
  %v1171 = vshrl.u32 %v1170, 7
  %v1172 = vsub.s32 0, %v1171
  %v1173 = vrot.slane %v833, %v1172
  %v1174 = vlaneseq
  %v1175 = vshrl.u32 %v1174, 7
  %v1176 = vsub.s32 0, %v1175
  %v1177 = vrot.slane %v847, %v1176
  %v1178 = vlaneseq
  %v1179 = vshrl.u32 %v1178, 7
  %v1180 = vsub.s32 0, %v1179
  %v1181 = vrot.slane %v855, %v1180
  %v1182 = vlaneseq
  %v1183 = vshrl.u32 %v1182, 7
  %v1184 = vsub.s32 0, %v1183
  %v1185 = vrot.slane %v857, %v1184
  %v1186 = vlaneseq
  %v1187 = vshrl.u32 %v1186, 7
  %v1188 = vsub.s32 0, %v1187
  %v1189 = vrot.slane %v840, %v1188
  %v1190 = vlaneseq
  %v1191 = vshrl.u32 %v1190, 7
  %v1192 = vsub.s32 0, %v1191
  %v1193 = vrot.slane %v854, %v1192
  %v1194 = vlaneseq
  %v1195 = vshrl.u32 %v1194, 7
  %v1196 = vsub.s32 0, %v1195
  %v1197 = vrot.slane %v856, %v1196
  %v1198 = vlaneseq
  %v1199 = vshrl.u32 %v1198, 7
  %v1200 = vsub.s32 0, %v1199
  %v1201 = vrot.slane %v858, %v1200
  %v1202 = vlaneseq
  %v1203 = vshrl.u32 %v1202, 7
  %v1204 = vsub.s32 0, %v1203
  %v1205 = vrot.slane %v882, %v1204
  %v1206 = vlaneseq
  %v1207 = vshrl.u32 %v1206, 7
  %v1208 = vsub.s32 0, %v1207
  %v1209 = vrot.slane %v896, %v1208
  %v1210 = vlaneseq
  %v1211 = vshrl.u32 %v1210, 7
  %v1212 = vsub.s32 0, %v1211
  %v1213 = vrot.slane %v904, %v1212
  %v1214 = vlaneseq
  %v1215 = vshrl.u32 %v1214, 7
  %v1216 = vsub.s32 0, %v1215
  %v1217 = vrot.slane %v906, %v1216
  %v1218 = vlaneseq
  %v1219 = vshrl.u32 %v1218, 7
  %v1220 = vsub.s32 0, %v1219
  %v1221 = vrot.slane %v889, %v1220
  %v1222 = vlaneseq
  %v1223 = vshrl.u32 %v1222, 7
  %v1224 = vsub.s32 0, %v1223
  %v1225 = vrot.slane %v903, %v1224
  %v1226 = vlaneseq
  %v1227 = vshrl.u32 %v1226, 7
  %v1228 = vsub.s32 0, %v1227
  %v1229 = vrot.slane %v905, %v1228
  %v1230 = vlaneseq
  %v1231 = vshrl.u32 %v1230, 7
  %v1232 = vsub.s32 0, %v1231
  %v1233 = vrot.slane %v907, %v1232
  %v1234 = vlaneseq
  %v1235 = vshrl.u32 %v1234, 7
  %v1236 = vsub.s32 0, %v1235
  %v1237 = vrot.slane %v931, %v1236
  %v1238 = vlaneseq
  %v1239 = vshrl.u32 %v1238, 7
  %v1240 = vsub.s32 0, %v1239
  %v1241 = vrot.slane %v945, %v1240
  %v1242 = vlaneseq
  %v1243 = vshrl.u32 %v1242, 7
  %v1244 = vsub.s32 0, %v1243
  %v1245 = vrot.slane %v953, %v1244
  %v1246 = vlaneseq
  %v1247 = vshrl.u32 %v1246, 7
  %v1248 = vsub.s32 0, %v1247
  %v1249 = vrot.slane %v955, %v1248
  %v1250 = vlaneseq
  %v1251 = vshrl.u32 %v1250, 7
  %v1252 = vsub.s32 0, %v1251
  %v1253 = vrot.slane %v938, %v1252
  %v1254 = vlaneseq
  %v1255 = vshrl.u32 %v1254, 7
  %v1256 = vsub.s32 0, %v1255
  %v1257 = vrot.slane %v952, %v1256
  %v1258 = vlaneseq
  %v1259 = vshrl.u32 %v1258, 7
  %v1260 = vsub.s32 0, %v1259
  %v1261 = vrot.slane %v954, %v1260
  %v1262 = vlaneseq
  %v1263 = vshrl.u32 %v1262, 7
  %v1264 = vsub.s32 0, %v1263
  %v1265 = vrot.slane %v956, %v1264
  %v1266 = vlaneseq
  %v1267 = vshrl.u32 %v1266, 7
  %v1268 = vsub.s32 0, %v1267
  %v1269 = vrot.slane %v980, %v1268
  %v1270 = vlaneseq
  %v1271 = vshrl.u32 %v1270, 7
  %v1272 = vsub.s32 0, %v1271
  %v1273 = vrot.slane %v994, %v1272
  %v1274 = vlaneseq
  %v1275 = vshrl.u32 %v1274, 7
  %v1276 = vsub.s32 0, %v1275
  %v1277 = vrot.slane %v1002, %v1276
  %v1278 = vlaneseq
  %v1279 = vshrl.u32 %v1278, 7
  %v1280 = vsub.s32 0, %v1279
  %v1281 = vrot.slane %v1004, %v1280
  %v1282 = vlaneseq
  %v1283 = vshrl.u32 %v1282, 7
  %v1284 = vsub.s32 0, %v1283
  %v1285 = vrot.slane %v987, %v1284
  %v1286 = vlaneseq
  %v1287 = vshrl.u32 %v1286, 7
  %v1288 = vsub.s32 0, %v1287
  %v1289 = vrot.slane %v1001, %v1288
  %v1290 = vlaneseq
  %v1291 = vshrl.u32 %v1290, 7
  %v1292 = vsub.s32 0, %v1291
  %v1293 = vrot.slane %v1003, %v1292
  %v1294 = vlaneseq
  %v1295 = vshrl.u32 %v1294, 7
  %v1296 = vsub.s32 0, %v1295
  %v1297 = vrot.slane %v1005, %v1296
  %v1298 = vlaneseq
  %v1299 = vshrl.u32 %v1298, 7
  %v1300 = vsub.s32 0, %v1299
  %v1301 = vrot.slane %v1029, %v1300
  %v1302 = vlaneseq
  %v1303 = vshrl.u32 %v1302, 7
  %v1304 = vsub.s32 0, %v1303
  %v1305 = vrot.slane %v1043, %v1304
  %v1306 = vlaneseq
  %v1307 = vshrl.u32 %v1306, 7
  %v1308 = vsub.s32 0, %v1307
  %v1309 = vrot.slane %v1051, %v1308
  %v1310 = vlaneseq
  %v1311 = vshrl.u32 %v1310, 7
  %v1312 = vsub.s32 0, %v1311
  %v1313 = vrot.slane %v1053, %v1312
  %v1314 = vlaneseq
  %v1315 = vshrl.u32 %v1314, 7
  %v1316 = vsub.s32 0, %v1315
  %v1317 = vrot.slane %v1036, %v1316
  %v1318 = vlaneseq
  %v1319 = vshrl.u32 %v1318, 7
  %v1320 = vsub.s32 0, %v1319
  %v1321 = vrot.slane %v1050, %v1320
  %v1322 = vlaneseq
  %v1323 = vshrl.u32 %v1322, 7
  %v1324 = vsub.s32 0, %v1323
  %v1325 = vrot.slane %v1052, %v1324
  %v1326 = vlaneseq
  %v1327 = vshrl.u32 %v1326, 7
  %v1328 = vsub.s32 0, %v1327
  %v1329 = vrot.slane %v1054, %v1328
  %v1330 = vlaneseq
  %v1331 = vshrl.u32 %v1330, 7
  %v1332 = vsub.s32 0, %v1331
  %v1333 = vrot.slane %v1078, %v1332
  %v1334 = vlaneseq
  %v1335 = vshrl.u32 %v1334, 7
  %v1336 = vsub.s32 0, %v1335
  %v1337 = vrot.slane %v1092, %v1336
  %v1338 = vlaneseq
  %v1339 = vshrl.u32 %v1338, 7
  %v1340 = vsub.s32 0, %v1339
  %v1341 = vrot.slane %v1100, %v1340
  %v1342 = vlaneseq
  %v1343 = vshrl.u32 %v1342, 7
  %v1344 = vsub.s32 0, %v1343
  %v1345 = vrot.slane %v1102, %v1344
  %v1346 = vlaneseq
  %v1347 = vshrl.u32 %v1346, 7
  %v1348 = vsub.s32 0, %v1347
  %v1349 = vrot.slane %v1085, %v1348
  %v1350 = vlaneseq
  %v1351 = vshrl.u32 %v1350, 7
  %v1352 = vsub.s32 0, %v1351
  %v1353 = vrot.slane %v1099, %v1352
  %v1354 = vlaneseq
  %v1355 = vshrl.u32 %v1354, 7
  %v1356 = vsub.s32 0, %v1355
  %v1357 = vrot.slane %v1101, %v1356
  %v1358 = vlaneseq
  %v1359 = vshrl.u32 %v1358, 7
  %v1360 = vsub.s32 0, %v1359
  %v1361 = vrot.slane %v1103, %v1360
  %vm1362 = vcmp.lt.s32.totalorder %v1105, %v1109
  %vm1363 = vcmp.lt.s32.totalorder %v1105, %v1113
  %vm1364 = vcmp.lt.s32.totalorder %v1105, %v1117
  %vm1365 = vcmp.lt.s32.totalorder %v1105, %v1121
  %vm1366 = vcmp.lt.s32.totalorder %v1105, %v1125
  %vm1367 = vcmp.lt.s32.totalorder %v1105, %v1129
  %vm1368 = vcmp.lt.s32.totalorder %v1105, %v1133
  %vm1369 = vcmp.lt.s32.totalorder %v1105, %v1137
  %vm1370 = vcmp.lt.s32.totalorder %v1105, %v1141
  %vm1371 = vcmp.lt.s32.totalorder %v1105, %v1145
  %vm1372 = vcmp.lt.s32.totalorder %v1105, %v1149
  %vm1373 = vcmp.lt.s32.totalorder %v1105, %v1153
  %vm1374 = vcmp.lt.s32.totalorder %v1105, %v1157
  %vm1375 = vcmp.lt.s32.totalorder %v1105, %v1161
  %vm1376 = vcmp.lt.s32.totalorder %v1105, %v1165
  %vm1377 = vcmp.lt.s32.totalorder %v1105, %v1169
  %vm1378 = vcmp.lt.s32.totalorder %v1105, %v1173
  %vm1379 = vcmp.lt.s32.totalorder %v1105, %v1177
  %vm1380 = vcmp.lt.s32.totalorder %v1105, %v1181
  %vm1381 = vcmp.lt.s32.totalorder %v1105, %v1185
  %vm1382 = vcmp.lt.s32.totalorder %v1105, %v1189
  %vm1383 = vcmp.lt.s32.totalorder %v1105, %v1193
  %vm1384 = vcmp.lt.s32.totalorder %v1105, %v1197
  %vm1385 = vcmp.lt.s32.totalorder %v1105, %v1201
  %vm1386 = vcmp.lt.s32.totalorder %v1105, %v1205
  %vm1387 = vcmp.lt.s32.totalorder %v1105, %v1209
  %vm1388 = vcmp.lt.s32.totalorder %v1105, %v1213
  %vm1389 = vcmp.lt.s32.totalorder %v1105, %v1217
  %vm1390 = vcmp.lt.s32.totalorder %v1105, %v1221
  %vm1391 = vcmp.lt.s32.totalorder %v1105, %v1225
  %vm1392 = vcmp.lt.s32.totalorder %v1105, %v1229
  %vm1393 = vcmp.lt.s32.totalorder %v1105, %v1233
  %vm1394 = vcmp.lt.s32.totalorder %v1105, %v1237
  %vm1395 = vcmp.lt.s32.totalorder %v1105, %v1241
  %vm1396 = vcmp.lt.s32.totalorder %v1105, %v1245
  %vm1397 = vcmp.lt.s32.totalorder %v1105, %v1249
  %vm1398 = vcmp.lt.s32.totalorder %v1105, %v1253
  %vm1399 = vcmp.lt.s32.totalorder %v1105, %v1257
  %vm1400 = vcmp.lt.s32.totalorder %v1105, %v1261
  %vm1401 = vcmp.lt.s32.totalorder %v1105, %v1265
  %vm1402 = vcmp.lt.s32.totalorder %v1105, %v1269
  %vm1403 = vcmp.lt.s32.totalorder %v1105, %v1273
  %vm1404 = vcmp.lt.s32.totalorder %v1105, %v1277
  %vm1405 = vcmp.lt.s32.totalorder %v1105, %v1281
  %vm1406 = vcmp.lt.s32.totalorder %v1105, %v1285
  %vm1407 = vcmp.lt.s32.totalorder %v1105, %v1289
  %vm1408 = vcmp.lt.s32.totalorder %v1105, %v1293
  %vm1409 = vcmp.lt.s32.totalorder %v1105, %v1297
  %vm1410 = vcmp.lt.s32.totalorder %v1105, %v1301
  %vm1411 = vcmp.lt.s32.totalorder %v1105, %v1305
  %vm1412 = vcmp.lt.s32.totalorder %v1105, %v1309
  %vm1413 = vcmp.lt.s32.totalorder %v1105, %v1313
  %vm1414 = vcmp.lt.s32.totalorder %v1105, %v1317
  %vm1415 = vcmp.lt.s32.totalorder %v1105, %v1321
  %vm1416 = vcmp.lt.s32.totalorder %v1105, %v1325
  %vm1417 = vcmp.lt.s32.totalorder %v1105, %v1329
  %vm1418 = vcmp.lt.s32.totalorder %v1105, %v1333
  %vm1419 = vcmp.lt.s32.totalorder %v1105, %v1337
  %vm1420 = vcmp.lt.s32.totalorder %v1105, %v1341
  %vm1421 = vcmp.lt.s32.totalorder %v1105, %v1345
  %vm1422 = vcmp.lt.s32.totalorder %v1105, %v1349
  %vm1423 = vcmp.lt.s32.totalorder %v1105, %v1353
  %vm1424 = vcmp.lt.s32.totalorder %v1105, %v1357
  %vm1425 = vcmp.lt.s32.totalorder %v1105, %v1361
  %v1426 = vsel %vm1362, 1, 0
  %v1427 = vsel %vm1363, 1, 0
  %v1428 = vsel %vm1364, 1, 0
  %v1429 = vsel %vm1365, 1, 0
  %v1430 = vsel %vm1366, 1, 0
  %v1431 = vsel %vm1367, 1, 0
  %v1432 = vsel %vm1368, 1, 0
  %v1433 = vsel %vm1369, 1, 0
  %v1434 = vsel %vm1370, 1, 0
  %v1435 = vsel %vm1371, 1, 0
  %v1436 = vsel %vm1372, 1, 0
  %v1437 = vsel %vm1373, 1, 0
  %v1438 = vsel %vm1374, 1, 0
  %v1439 = vsel %vm1375, 1, 0
  %v1440 = vsel %vm1376, 1, 0
  %v1441 = vsel %vm1377, 1, 0
  %v1442 = vsel %vm1378, 1, 0
  %v1443 = vsel %vm1379, 1, 0
  %v1444 = vsel %vm1380, 1, 0
  %v1445 = vsel %vm1381, 1, 0
  %v1446 = vsel %vm1382, 1, 0
  %v1447 = vsel %vm1383, 1, 0
  %v1448 = vsel %vm1384, 1, 0
  %v1449 = vsel %vm1385, 1, 0
  %v1450 = vsel %vm1386, 1, 0
  %v1451 = vsel %vm1387, 1, 0
  %v1452 = vsel %vm1388, 1, 0
  %v1453 = vsel %vm1389, 1, 0
  %v1454 = vsel %vm1390, 1, 0
  %v1455 = vsel %vm1391, 1, 0
  %v1456 = vsel %vm1392, 1, 0
  %v1457 = vsel %vm1393, 1, 0
  %v1458 = vsel %vm1394, 1, 0
  %v1459 = vsel %vm1395, 1, 0
  %v1460 = vsel %vm1396, 1, 0
  %v1461 = vsel %vm1397, 1, 0
  %v1462 = vsel %vm1398, 1, 0
  %v1463 = vsel %vm1399, 1, 0
  %v1464 = vsel %vm1400, 1, 0
  %v1465 = vsel %vm1401, 1, 0
  %v1466 = vsel %vm1402, 1, 0
  %v1467 = vsel %vm1403, 1, 0
  %v1468 = vsel %vm1404, 1, 0
  %v1469 = vsel %vm1405, 1, 0
  %v1470 = vsel %vm1406, 1, 0
  %v1471 = vsel %vm1407, 1, 0
  %v1472 = vsel %vm1408, 1, 0
  %v1473 = vsel %vm1409, 1, 0
  %v1474 = vsel %vm1410, 1, 0
  %v1475 = vsel %vm1411, 1, 0
  %v1476 = vsel %vm1412, 1, 0
  %v1477 = vsel %vm1413, 1, 0
  %v1478 = vsel %vm1414, 1, 0
  %v1479 = vsel %vm1415, 1, 0
  %v1480 = vsel %vm1416, 1, 0
  %v1481 = vsel %vm1417, 1, 0
  %v1482 = vsel %vm1418, 1, 0
  %v1483 = vsel %vm1419, 1, 0
  %v1484 = vsel %vm1420, 1, 0
  %v1485 = vsel %vm1421, 1, 0
  %v1486 = vsel %vm1422, 1, 0
  %v1487 = vsel %vm1423, 1, 0
  %v1488 = vsel %vm1424, 1, 0
  %v1489 = vsel %vm1425, 1, 0
  %v1490 = vcvt.s32.f32 %v1426
  %v1491 = vcvt.s32.f32 %v1427
  %v1492 = vcvt.s32.f32 %v1428
  %v1493 = vcvt.s32.f32 %v1429
  %v1494 = vcvt.s32.f32 %v1430
  %v1495 = vcvt.s32.f32 %v1431
  %v1496 = vcvt.s32.f32 %v1432
  %v1497 = vcvt.s32.f32 %v1433
  %v1498 = vcvt.s32.f32 %v1434
  %v1499 = vcvt.s32.f32 %v1435
  %v1500 = vcvt.s32.f32 %v1436
  %v1501 = vcvt.s32.f32 %v1437
  %v1502 = vcvt.s32.f32 %v1438
  %v1503 = vcvt.s32.f32 %v1439
  %v1504 = vcvt.s32.f32 %v1440
  %v1505 = vcvt.s32.f32 %v1441
  %v1506 = vcvt.s32.f32 %v1442
  %v1507 = vcvt.s32.f32 %v1443
  %v1508 = vcvt.s32.f32 %v1444
  %v1509 = vcvt.s32.f32 %v1445
  %v1510 = vcvt.s32.f32 %v1446
  %v1511 = vcvt.s32.f32 %v1447
  %v1512 = vcvt.s32.f32 %v1448
  %v1513 = vcvt.s32.f32 %v1449
  %v1514 = vcvt.s32.f32 %v1450
  %v1515 = vcvt.s32.f32 %v1451
  %v1516 = vcvt.s32.f32 %v1452
  %v1517 = vcvt.s32.f32 %v1453
  %v1518 = vcvt.s32.f32 %v1454
  %v1519 = vcvt.s32.f32 %v1455
  %v1520 = vcvt.s32.f32 %v1456
  %v1521 = vcvt.s32.f32 %v1457
  %v1522 = vcvt.s32.f32 %v1458
  %v1523 = vcvt.s32.f32 %v1459
  %v1524 = vcvt.s32.f32 %v1460
  %v1525 = vcvt.s32.f32 %v1461
  %v1526 = vcvt.s32.f32 %v1462
  %v1527 = vcvt.s32.f32 %v1463
  %v1528 = vcvt.s32.f32 %v1464
  %v1529 = vcvt.s32.f32 %v1465
  %v1530 = vcvt.s32.f32 %v1466
  %v1531 = vcvt.s32.f32 %v1467
  %v1532 = vcvt.s32.f32 %v1468
  %v1533 = vcvt.s32.f32 %v1469
  %v1534 = vcvt.s32.f32 %v1470
  %v1535 = vcvt.s32.f32 %v1471
  %v1536 = vcvt.s32.f32 %v1472
  %v1537 = vcvt.s32.f32 %v1473
  %v1538 = vcvt.s32.f32 %v1474
  %v1539 = vcvt.s32.f32 %v1475
  %v1540 = vcvt.s32.f32 %v1476
  %v1541 = vcvt.s32.f32 %v1477
  %v1542 = vcvt.s32.f32 %v1478
  %v1543 = vcvt.s32.f32 %v1479
  %v1544 = vcvt.s32.f32 %v1480
  %v1545 = vcvt.s32.f32 %v1481
  %v1546 = vcvt.s32.f32 %v1482
  %v1547 = vcvt.s32.f32 %v1483
  %v1548 = vcvt.s32.f32 %v1484
  %v1549 = vcvt.s32.f32 %v1485
  %v1550 = vcvt.s32.f32 %v1486
  %v1551 = vcvt.s32.f32 %v1487
  %v1552 = vcvt.s32.f32 %v1488
  %v1553 = vcvt.s32.f32 %v1489
  %1555 = vset.pattern.permute.xlu0 0
  %1556 = vperm.xlu0 %1555, %v1490
  %v1557 = vpop.permute.xlu0 %1556
  %1560 = vset.pattern.permute.xlu0 0
  %1561 = vperm.xlu0 %1560, %v1491
  %v1562 = vpop.permute.xlu0 %1561
  %1565 = vset.pattern.permute.xlu0 0
  %1566 = vperm.xlu0 %1565, %v1492
  %v1567 = vpop.permute.xlu0 %1566
  %1570 = vset.pattern.permute.xlu0 0
  %1571 = vperm.xlu0 %1570, %v1493
  %v1572 = vpop.permute.xlu0 %1571
  %1575 = vset.pattern.permute.xlu0 0
  %1576 = vperm.xlu0 %1575, %v1494
  %v1577 = vpop.permute.xlu0 %1576
  %1580 = vset.pattern.permute.xlu0 0
  %1581 = vperm.xlu0 %1580, %v1495
  %v1582 = vpop.permute.xlu0 %1581
  %1585 = vset.pattern.permute.xlu0 0
  %1586 = vperm.xlu0 %1585, %v1496
  %v1587 = vpop.permute.xlu0 %1586
  %1590 = vset.pattern.permute.xlu0 0
  %1591 = vperm.xlu0 %1590, %v1497
  %v1592 = vpop.permute.xlu0 %1591
  %1595 = vset.pattern.permute.xlu0 0
  %1596 = vperm.xlu0 %1595, %v1498
  %v1597 = vpop.permute.xlu0 %1596
  %1600 = vset.pattern.permute.xlu0 0
  %1601 = vperm.xlu0 %1600, %v1499
  %v1602 = vpop.permute.xlu0 %1601
  %1605 = vset.pattern.permute.xlu0 0
  %1606 = vperm.xlu0 %1605, %v1500
  %v1607 = vpop.permute.xlu0 %1606
  %1610 = vset.pattern.permute.xlu0 0
  %1611 = vperm.xlu0 %1610, %v1501
  %v1612 = vpop.permute.xlu0 %1611
  %1615 = vset.pattern.permute.xlu0 0
  %1616 = vperm.xlu0 %1615, %v1502
  %v1617 = vpop.permute.xlu0 %1616
  %1620 = vset.pattern.permute.xlu0 0
  %1621 = vperm.xlu0 %1620, %v1503
  %v1622 = vpop.permute.xlu0 %1621
  %1625 = vset.pattern.permute.xlu0 0
  %1626 = vperm.xlu0 %1625, %v1504
  %v1627 = vpop.permute.xlu0 %1626
  %1630 = vset.pattern.permute.xlu0 0
  %1631 = vperm.xlu0 %1630, %v1505
  %v1632 = vpop.permute.xlu0 %1631
  %1635 = vset.pattern.permute.xlu0 0
  %1636 = vperm.xlu0 %1635, %v1506
  %v1637 = vpop.permute.xlu0 %1636
  %1640 = vset.pattern.permute.xlu0 0
  %1641 = vperm.xlu0 %1640, %v1507
  %v1642 = vpop.permute.xlu0 %1641
  %1645 = vset.pattern.permute.xlu0 0
  %1646 = vperm.xlu0 %1645, %v1508
  %v1647 = vpop.permute.xlu0 %1646
  %1650 = vset.pattern.permute.xlu0 0
  %1651 = vperm.xlu0 %1650, %v1509
  %v1652 = vpop.permute.xlu0 %1651
  %1655 = vset.pattern.permute.xlu0 0
  %1656 = vperm.xlu0 %1655, %v1510
  %v1657 = vpop.permute.xlu0 %1656
  %1660 = vset.pattern.permute.xlu0 0
  %1661 = vperm.xlu0 %1660, %v1511
  %v1662 = vpop.permute.xlu0 %1661
  %1665 = vset.pattern.permute.xlu0 0
  %1666 = vperm.xlu0 %1665, %v1512
  %v1667 = vpop.permute.xlu0 %1666
  %1670 = vset.pattern.permute.xlu0 0
  %1671 = vperm.xlu0 %1670, %v1513
  %v1672 = vpop.permute.xlu0 %1671
  %1675 = vset.pattern.permute.xlu0 0
  %1676 = vperm.xlu0 %1675, %v1514
  %v1677 = vpop.permute.xlu0 %1676
  %1680 = vset.pattern.permute.xlu0 0
  %1681 = vperm.xlu0 %1680, %v1515
  %v1682 = vpop.permute.xlu0 %1681
  %1685 = vset.pattern.permute.xlu0 0
  %1686 = vperm.xlu0 %1685, %v1516
  %v1687 = vpop.permute.xlu0 %1686
  %1690 = vset.pattern.permute.xlu0 0
  %1691 = vperm.xlu0 %1690, %v1517
  %v1692 = vpop.permute.xlu0 %1691
  %1695 = vset.pattern.permute.xlu0 0
  %1696 = vperm.xlu0 %1695, %v1518
  %v1697 = vpop.permute.xlu0 %1696
  %1700 = vset.pattern.permute.xlu0 0
  %1701 = vperm.xlu0 %1700, %v1519
  %v1702 = vpop.permute.xlu0 %1701
  %1705 = vset.pattern.permute.xlu0 0
  %1706 = vperm.xlu0 %1705, %v1520
  %v1707 = vpop.permute.xlu0 %1706
  %1710 = vset.pattern.permute.xlu0 0
  %1711 = vperm.xlu0 %1710, %v1521
  %v1712 = vpop.permute.xlu0 %1711
  %1715 = vset.pattern.permute.xlu0 0
  %1716 = vperm.xlu0 %1715, %v1522
  %v1717 = vpop.permute.xlu0 %1716
  %1720 = vset.pattern.permute.xlu0 0
  %1721 = vperm.xlu0 %1720, %v1523
  %v1722 = vpop.permute.xlu0 %1721
  %1725 = vset.pattern.permute.xlu0 0
  %1726 = vperm.xlu0 %1725, %v1524
  %v1727 = vpop.permute.xlu0 %1726
  %1730 = vset.pattern.permute.xlu0 0
  %1731 = vperm.xlu0 %1730, %v1525
  %v1732 = vpop.permute.xlu0 %1731
  %1735 = vset.pattern.permute.xlu0 0
  %1736 = vperm.xlu0 %1735, %v1526
  %v1737 = vpop.permute.xlu0 %1736
  %1740 = vset.pattern.permute.xlu0 0
  %1741 = vperm.xlu0 %1740, %v1527
  %v1742 = vpop.permute.xlu0 %1741
  %1745 = vset.pattern.permute.xlu0 0
  %1746 = vperm.xlu0 %1745, %v1528
  %v1747 = vpop.permute.xlu0 %1746
  %1750 = vset.pattern.permute.xlu0 0
  %1751 = vperm.xlu0 %1750, %v1529
  %v1752 = vpop.permute.xlu0 %1751
  %1755 = vset.pattern.permute.xlu0 0
  %1756 = vperm.xlu0 %1755, %v1530
  %v1757 = vpop.permute.xlu0 %1756
  %1760 = vset.pattern.permute.xlu0 0
  %1761 = vperm.xlu0 %1760, %v1531
  %v1762 = vpop.permute.xlu0 %1761
  %1765 = vset.pattern.permute.xlu0 0
  %1766 = vperm.xlu0 %1765, %v1532
  %v1767 = vpop.permute.xlu0 %1766
  %1770 = vset.pattern.permute.xlu0 0
  %1771 = vperm.xlu0 %1770, %v1533
  %v1772 = vpop.permute.xlu0 %1771
  %1775 = vset.pattern.permute.xlu0 0
  %1776 = vperm.xlu0 %1775, %v1534
  %v1777 = vpop.permute.xlu0 %1776
  %1780 = vset.pattern.permute.xlu0 0
  %1781 = vperm.xlu0 %1780, %v1535
  %v1782 = vpop.permute.xlu0 %1781
  %1785 = vset.pattern.permute.xlu0 0
  %1786 = vperm.xlu0 %1785, %v1536
  %v1787 = vpop.permute.xlu0 %1786
  %1790 = vset.pattern.permute.xlu0 0
  %1791 = vperm.xlu0 %1790, %v1537
  %v1792 = vpop.permute.xlu0 %1791
  %1795 = vset.pattern.permute.xlu0 0
  %1796 = vperm.xlu0 %1795, %v1538
  %v1797 = vpop.permute.xlu0 %1796
  %1800 = vset.pattern.permute.xlu0 0
  %1801 = vperm.xlu0 %1800, %v1539
  %v1802 = vpop.permute.xlu0 %1801
  %1805 = vset.pattern.permute.xlu0 0
  %1806 = vperm.xlu0 %1805, %v1540
  %v1807 = vpop.permute.xlu0 %1806
  %1810 = vset.pattern.permute.xlu0 0
  %1811 = vperm.xlu0 %1810, %v1541
  %v1812 = vpop.permute.xlu0 %1811
  %1815 = vset.pattern.permute.xlu0 0
  %1816 = vperm.xlu0 %1815, %v1542
  %v1817 = vpop.permute.xlu0 %1816
  %1820 = vset.pattern.permute.xlu0 0
  %1821 = vperm.xlu0 %1820, %v1543
  %v1822 = vpop.permute.xlu0 %1821
  %1825 = vset.pattern.permute.xlu0 0
  %1826 = vperm.xlu0 %1825, %v1544
  %v1827 = vpop.permute.xlu0 %1826
  %1830 = vset.pattern.permute.xlu0 0
  %1831 = vperm.xlu0 %1830, %v1545
  %v1832 = vpop.permute.xlu0 %1831
  %1835 = vset.pattern.permute.xlu0 0
  %1836 = vperm.xlu0 %1835, %v1546
  %v1837 = vpop.permute.xlu0 %1836
  %1840 = vset.pattern.permute.xlu0 0
  %1841 = vperm.xlu0 %1840, %v1547
  %v1842 = vpop.permute.xlu0 %1841
  %1845 = vset.pattern.permute.xlu0 0
  %1846 = vperm.xlu0 %1845, %v1548
  %v1847 = vpop.permute.xlu0 %1846
  %1850 = vset.pattern.permute.xlu0 0
  %1851 = vperm.xlu0 %1850, %v1549
  %v1852 = vpop.permute.xlu0 %1851
  %1855 = vset.pattern.permute.xlu0 0
  %1856 = vperm.xlu0 %1855, %v1550
  %v1857 = vpop.permute.xlu0 %1856
  %1860 = vset.pattern.permute.xlu0 0
  %1861 = vperm.xlu0 %1860, %v1551
  %v1862 = vpop.permute.xlu0 %1861
  %1865 = vset.pattern.permute.xlu0 0
  %1866 = vperm.xlu0 %1865, %v1552
  %v1867 = vpop.permute.xlu0 %1866
  %1870 = vset.pattern.permute.xlu0 0
  %1871 = vperm.xlu0 %1870, %v1553
  %v1872 = vpop.permute.xlu0 %1871
  %v1874 = vmul.f32 %v640, %v1557
  %v1875 = vmul.f32 %v641, %v1562
  %v1876 = vmul.f32 %v642, %v1567
  %v1877 = vmul.f32 %v643, %v1572
  %v1878 = vmul.f32 %v644, %v1577
  %v1879 = vmul.f32 %v645, %v1582
  %v1880 = vmul.f32 %v646, %v1587
  %v1881 = vmul.f32 %v647, %v1592
  %v1882 = vmul.f32 %v648, %v1597
  %v1883 = vmul.f32 %v649, %v1602
  %v1884 = vmul.f32 %v650, %v1607
  %v1885 = vmul.f32 %v651, %v1612
  %v1886 = vmul.f32 %v652, %v1617
  %v1887 = vmul.f32 %v653, %v1622
  %v1888 = vmul.f32 %v654, %v1627
  %v1889 = vmul.f32 %v655, %v1632
  %v1890 = vmul.f32 %v656, %v1637
  %v1891 = vmul.f32 %v657, %v1642
  %v1892 = vmul.f32 %v658, %v1647
  %v1893 = vmul.f32 %v659, %v1652
  %v1894 = vmul.f32 %v660, %v1657
  %v1895 = vmul.f32 %v661, %v1662
  %v1896 = vmul.f32 %v662, %v1667
  %v1897 = vmul.f32 %v663, %v1672
  %v1898 = vmul.f32 %v664, %v1677
  %v1899 = vmul.f32 %v665, %v1682
  %v1900 = vmul.f32 %v666, %v1687
  %v1901 = vmul.f32 %v667, %v1692
  %v1902 = vmul.f32 %v668, %v1697
  %v1903 = vmul.f32 %v669, %v1702
  %v1904 = vmul.f32 %v670, %v1707
  %v1905 = vmul.f32 %v671, %v1712
  %v1906 = vmul.f32 %v672, %v1717
  %v1907 = vmul.f32 %v673, %v1722
  %v1908 = vmul.f32 %v674, %v1727
  %v1909 = vmul.f32 %v675, %v1732
  %v1910 = vmul.f32 %v676, %v1737
  %v1911 = vmul.f32 %v677, %v1742
  %v1912 = vmul.f32 %v678, %v1747
  %v1913 = vmul.f32 %v679, %v1752
  %v1914 = vmul.f32 %v680, %v1757
  %v1915 = vmul.f32 %v681, %v1762
  %v1916 = vmul.f32 %v682, %v1767
  %v1917 = vmul.f32 %v683, %v1772
  %v1918 = vmul.f32 %v684, %v1777
  %v1919 = vmul.f32 %v685, %v1782
  %v1920 = vmul.f32 %v686, %v1787
  %v1921 = vmul.f32 %v687, %v1792
  %v1922 = vmul.f32 %v688, %v1797
  %v1923 = vmul.f32 %v689, %v1802
  %v1924 = vmul.f32 %v690, %v1807
  %v1925 = vmul.f32 %v691, %v1812
  %v1926 = vmul.f32 %v692, %v1817
  %v1927 = vmul.f32 %v693, %v1822
  %v1928 = vmul.f32 %v694, %v1827
  %v1929 = vmul.f32 %v695, %v1832
  %v1930 = vmul.f32 %v696, %v1837
  %v1931 = vmul.f32 %v697, %v1842
  %v1932 = vmul.f32 %v698, %v1847
  %v1933 = vmul.f32 %v699, %v1852
  %v1934 = vmul.f32 %v700, %v1857
  %v1935 = vmul.f32 %v701, %v1862
  %v1936 = vmul.f32 %v702, %v1867
  %v1937 = vmul.f32 %v703, %v1872
  %vm1938 = vcmask 261120
  %v1939 = vsel %vm1938, %v1874, -inf
  %v1940 = vrot.slane %v1939, 4
  %v1941 = vmax.f32 %v1939, %v1940
  %v1942 = vrot.slane %v1941, 2
  %v1943 = vmax.f32 %v1941, %v1942
  %v1944 = vrot.slane %v1943, 1
  %v1945 = vmax.f32 %v1943, %v1944
  %v1946 = vsel %vm1938, %v1875, -inf
  %v1947 = vrot.slane %v1946, 4
  %v1948 = vmax.f32 %v1946, %v1947
  %v1949 = vrot.slane %v1948, 2
  %v1950 = vmax.f32 %v1948, %v1949
  %v1951 = vrot.slane %v1950, 1
  %v1952 = vmax.f32 %v1950, %v1951
  %v1953 = vsel %vm1938, %v1876, -inf
  %v1954 = vrot.slane %v1953, 4
  %v1955 = vmax.f32 %v1953, %v1954
  %v1956 = vrot.slane %v1955, 2
  %v1957 = vmax.f32 %v1955, %v1956
  %v1958 = vrot.slane %v1957, 1
  %v1959 = vmax.f32 %v1957, %v1958
  %v1960 = vsel %vm1938, %v1877, -inf
  %v1961 = vrot.slane %v1960, 4
  %v1962 = vmax.f32 %v1960, %v1961
  %v1963 = vrot.slane %v1962, 2
  %v1964 = vmax.f32 %v1962, %v1963
  %v1965 = vrot.slane %v1964, 1
  %v1966 = vmax.f32 %v1964, %v1965
  %v1967 = vsel %vm1938, %v1878, -inf
  %v1968 = vrot.slane %v1967, 4
  %v1969 = vmax.f32 %v1967, %v1968
  %v1970 = vrot.slane %v1969, 2
  %v1971 = vmax.f32 %v1969, %v1970
  %v1972 = vrot.slane %v1971, 1
  %v1973 = vmax.f32 %v1971, %v1972
  %v1974 = vsel %vm1938, %v1879, -inf
  %v1975 = vrot.slane %v1974, 4
  %v1976 = vmax.f32 %v1974, %v1975
  %v1977 = vrot.slane %v1976, 2
  %v1978 = vmax.f32 %v1976, %v1977
  %v1979 = vrot.slane %v1978, 1
  %v1980 = vmax.f32 %v1978, %v1979
  %v1981 = vsel %vm1938, %v1880, -inf
  %v1982 = vrot.slane %v1981, 4
  %v1983 = vmax.f32 %v1981, %v1982
  %v1984 = vrot.slane %v1983, 2
  %v1985 = vmax.f32 %v1983, %v1984
  %v1986 = vrot.slane %v1985, 1
  %v1987 = vmax.f32 %v1985, %v1986
  %v1988 = vsel %vm1938, %v1881, -inf
  %v1989 = vrot.slane %v1988, 4
  %v1990 = vmax.f32 %v1988, %v1989
  %v1991 = vrot.slane %v1990, 2
  %v1992 = vmax.f32 %v1990, %v1991
  %v1993 = vrot.slane %v1992, 1
  %v1994 = vmax.f32 %v1992, %v1993
  %v1995 = vsel %vm1938, %v1882, -inf
  %v1996 = vrot.slane %v1995, 4
  %v1997 = vmax.f32 %v1995, %v1996
  %v1998 = vrot.slane %v1997, 2
  %v1999 = vmax.f32 %v1997, %v1998
  %v2000 = vrot.slane %v1999, 1
  %v2001 = vmax.f32 %v1999, %v2000
  %v2002 = vsel %vm1938, %v1883, -inf
  %v2003 = vrot.slane %v2002, 4
  %v2004 = vmax.f32 %v2002, %v2003
  %v2005 = vrot.slane %v2004, 2
  %v2006 = vmax.f32 %v2004, %v2005
  %v2007 = vrot.slane %v2006, 1
  %v2008 = vmax.f32 %v2006, %v2007
  %v2009 = vsel %vm1938, %v1884, -inf
  %v2010 = vrot.slane %v2009, 4
  %v2011 = vmax.f32 %v2009, %v2010
  %v2012 = vrot.slane %v2011, 2
  %v2013 = vmax.f32 %v2011, %v2012
  %v2014 = vrot.slane %v2013, 1
  %v2015 = vmax.f32 %v2013, %v2014
  %v2016 = vsel %vm1938, %v1885, -inf
  %v2017 = vrot.slane %v2016, 4
  %v2018 = vmax.f32 %v2016, %v2017
  %v2019 = vrot.slane %v2018, 2
  %v2020 = vmax.f32 %v2018, %v2019
  %v2021 = vrot.slane %v2020, 1
  %v2022 = vmax.f32 %v2020, %v2021
  %v2023 = vsel %vm1938, %v1886, -inf
  %v2024 = vrot.slane %v2023, 4
  %v2025 = vmax.f32 %v2023, %v2024
  %v2026 = vrot.slane %v2025, 2
  %v2027 = vmax.f32 %v2025, %v2026
  %v2028 = vrot.slane %v2027, 1
  %v2029 = vmax.f32 %v2027, %v2028
  %v2030 = vsel %vm1938, %v1887, -inf
  %v2031 = vrot.slane %v2030, 4
  %v2032 = vmax.f32 %v2030, %v2031
  %v2033 = vrot.slane %v2032, 2
  %v2034 = vmax.f32 %v2032, %v2033
  %v2035 = vrot.slane %v2034, 1
  %v2036 = vmax.f32 %v2034, %v2035
  %v2037 = vsel %vm1938, %v1888, -inf
  %v2038 = vrot.slane %v2037, 4
  %v2039 = vmax.f32 %v2037, %v2038
  %v2040 = vrot.slane %v2039, 2
  %v2041 = vmax.f32 %v2039, %v2040
  %v2042 = vrot.slane %v2041, 1
  %v2043 = vmax.f32 %v2041, %v2042
  %v2044 = vsel %vm1938, %v1889, -inf
  %v2045 = vrot.slane %v2044, 4
  %v2046 = vmax.f32 %v2044, %v2045
  %v2047 = vrot.slane %v2046, 2
  %v2048 = vmax.f32 %v2046, %v2047
  %v2049 = vrot.slane %v2048, 1
  %v2050 = vmax.f32 %v2048, %v2049
  %v2051 = vsel %vm1938, %v1890, -inf
  %v2052 = vrot.slane %v2051, 4
  %v2053 = vmax.f32 %v2051, %v2052
  %v2054 = vrot.slane %v2053, 2
  %v2055 = vmax.f32 %v2053, %v2054
  %v2056 = vrot.slane %v2055, 1
  %v2057 = vmax.f32 %v2055, %v2056
  %v2058 = vsel %vm1938, %v1891, -inf
  %v2059 = vrot.slane %v2058, 4
  %v2060 = vmax.f32 %v2058, %v2059
  %v2061 = vrot.slane %v2060, 2
  %v2062 = vmax.f32 %v2060, %v2061
  %v2063 = vrot.slane %v2062, 1
  %v2064 = vmax.f32 %v2062, %v2063
  %v2065 = vsel %vm1938, %v1892, -inf
  %v2066 = vrot.slane %v2065, 4
  %v2067 = vmax.f32 %v2065, %v2066
  %v2068 = vrot.slane %v2067, 2
  %v2069 = vmax.f32 %v2067, %v2068
  %v2070 = vrot.slane %v2069, 1
  %v2071 = vmax.f32 %v2069, %v2070
  %v2072 = vsel %vm1938, %v1893, -inf
  %v2073 = vrot.slane %v2072, 4
  %v2074 = vmax.f32 %v2072, %v2073
  %v2075 = vrot.slane %v2074, 2
  %v2076 = vmax.f32 %v2074, %v2075
  %v2077 = vrot.slane %v2076, 1
  %v2078 = vmax.f32 %v2076, %v2077
  %v2079 = vsel %vm1938, %v1894, -inf
  %v2080 = vrot.slane %v2079, 4
  %v2081 = vmax.f32 %v2079, %v2080
  %v2082 = vrot.slane %v2081, 2
  %v2083 = vmax.f32 %v2081, %v2082
  %v2084 = vrot.slane %v2083, 1
  %v2085 = vmax.f32 %v2083, %v2084
  %v2086 = vsel %vm1938, %v1895, -inf
  %v2087 = vrot.slane %v2086, 4
  %v2088 = vmax.f32 %v2086, %v2087
  %v2089 = vrot.slane %v2088, 2
  %v2090 = vmax.f32 %v2088, %v2089
  %v2091 = vrot.slane %v2090, 1
  %v2092 = vmax.f32 %v2090, %v2091
  %v2093 = vsel %vm1938, %v1896, -inf
  %v2094 = vrot.slane %v2093, 4
  %v2095 = vmax.f32 %v2093, %v2094
  %v2096 = vrot.slane %v2095, 2
  %v2097 = vmax.f32 %v2095, %v2096
  %v2098 = vrot.slane %v2097, 1
  %v2099 = vmax.f32 %v2097, %v2098
  %v2100 = vsel %vm1938, %v1897, -inf
  %v2101 = vrot.slane %v2100, 4
  %v2102 = vmax.f32 %v2100, %v2101
  %v2103 = vrot.slane %v2102, 2
  %v2104 = vmax.f32 %v2102, %v2103
  %v2105 = vrot.slane %v2104, 1
  %v2106 = vmax.f32 %v2104, %v2105
  %v2107 = vsel %vm1938, %v1898, -inf
  %v2108 = vrot.slane %v2107, 4
  %v2109 = vmax.f32 %v2107, %v2108
  %v2110 = vrot.slane %v2109, 2
  %v2111 = vmax.f32 %v2109, %v2110
  %v2112 = vrot.slane %v2111, 1
  %v2113 = vmax.f32 %v2111, %v2112
  %v2114 = vsel %vm1938, %v1899, -inf
  %v2115 = vrot.slane %v2114, 4
  %v2116 = vmax.f32 %v2114, %v2115
  %v2117 = vrot.slane %v2116, 2
  %v2118 = vmax.f32 %v2116, %v2117
  %v2119 = vrot.slane %v2118, 1
  %v2120 = vmax.f32 %v2118, %v2119
  %v2121 = vsel %vm1938, %v1900, -inf
  %v2122 = vrot.slane %v2121, 4
  %v2123 = vmax.f32 %v2121, %v2122
  %v2124 = vrot.slane %v2123, 2
  %v2125 = vmax.f32 %v2123, %v2124
  %v2126 = vrot.slane %v2125, 1
  %v2127 = vmax.f32 %v2125, %v2126
  %v2128 = vsel %vm1938, %v1901, -inf
  %v2129 = vrot.slane %v2128, 4
  %v2130 = vmax.f32 %v2128, %v2129
  %v2131 = vrot.slane %v2130, 2
  %v2132 = vmax.f32 %v2130, %v2131
  %v2133 = vrot.slane %v2132, 1
  %v2134 = vmax.f32 %v2132, %v2133
  %v2135 = vsel %vm1938, %v1902, -inf
  %v2136 = vrot.slane %v2135, 4
  %v2137 = vmax.f32 %v2135, %v2136
  %v2138 = vrot.slane %v2137, 2
  %v2139 = vmax.f32 %v2137, %v2138
  %v2140 = vrot.slane %v2139, 1
  %v2141 = vmax.f32 %v2139, %v2140
  %v2142 = vsel %vm1938, %v1903, -inf
  %v2143 = vrot.slane %v2142, 4
  %v2144 = vmax.f32 %v2142, %v2143
  %v2145 = vrot.slane %v2144, 2
  %v2146 = vmax.f32 %v2144, %v2145
  %v2147 = vrot.slane %v2146, 1
  %v2148 = vmax.f32 %v2146, %v2147
  %v2149 = vsel %vm1938, %v1904, -inf
  %v2150 = vrot.slane %v2149, 4
  %v2151 = vmax.f32 %v2149, %v2150
  %v2152 = vrot.slane %v2151, 2
  %v2153 = vmax.f32 %v2151, %v2152
  %v2154 = vrot.slane %v2153, 1
  %v2155 = vmax.f32 %v2153, %v2154
  %v2156 = vsel %vm1938, %v1905, -inf
  %v2157 = vrot.slane %v2156, 4
  %v2158 = vmax.f32 %v2156, %v2157
  %v2159 = vrot.slane %v2158, 2
  %v2160 = vmax.f32 %v2158, %v2159
  %v2161 = vrot.slane %v2160, 1
  %v2162 = vmax.f32 %v2160, %v2161
  %v2163 = vsel %vm1938, %v1906, -inf
  %v2164 = vrot.slane %v2163, 4
  %v2165 = vmax.f32 %v2163, %v2164
  %v2166 = vrot.slane %v2165, 2
  %v2167 = vmax.f32 %v2165, %v2166
  %v2168 = vrot.slane %v2167, 1
  %v2169 = vmax.f32 %v2167, %v2168
  %v2170 = vsel %vm1938, %v1907, -inf
  %v2171 = vrot.slane %v2170, 4
  %v2172 = vmax.f32 %v2170, %v2171
  %v2173 = vrot.slane %v2172, 2
  %v2174 = vmax.f32 %v2172, %v2173
  %v2175 = vrot.slane %v2174, 1
  %v2176 = vmax.f32 %v2174, %v2175
  %v2177 = vsel %vm1938, %v1908, -inf
  %v2178 = vrot.slane %v2177, 4
  %v2179 = vmax.f32 %v2177, %v2178
  %v2180 = vrot.slane %v2179, 2
  %v2181 = vmax.f32 %v2179, %v2180
  %v2182 = vrot.slane %v2181, 1
  %v2183 = vmax.f32 %v2181, %v2182
  %v2184 = vsel %vm1938, %v1909, -inf
  %v2185 = vrot.slane %v2184, 4
  %v2186 = vmax.f32 %v2184, %v2185
  %v2187 = vrot.slane %v2186, 2
  %v2188 = vmax.f32 %v2186, %v2187
  %v2189 = vrot.slane %v2188, 1
  %v2190 = vmax.f32 %v2188, %v2189
  %v2191 = vsel %vm1938, %v1910, -inf
  %v2192 = vrot.slane %v2191, 4
  %v2193 = vmax.f32 %v2191, %v2192
  %v2194 = vrot.slane %v2193, 2
  %v2195 = vmax.f32 %v2193, %v2194
  %v2196 = vrot.slane %v2195, 1
  %v2197 = vmax.f32 %v2195, %v2196
  %v2198 = vsel %vm1938, %v1911, -inf
  %v2199 = vrot.slane %v2198, 4
  %v2200 = vmax.f32 %v2198, %v2199
  %v2201 = vrot.slane %v2200, 2
  %v2202 = vmax.f32 %v2200, %v2201
  %v2203 = vrot.slane %v2202, 1
  %v2204 = vmax.f32 %v2202, %v2203
  %v2205 = vsel %vm1938, %v1912, -inf
  %v2206 = vrot.slane %v2205, 4
  %v2207 = vmax.f32 %v2205, %v2206
  %v2208 = vrot.slane %v2207, 2
  %v2209 = vmax.f32 %v2207, %v2208
  %v2210 = vrot.slane %v2209, 1
  %v2211 = vmax.f32 %v2209, %v2210
  %v2212 = vsel %vm1938, %v1913, -inf
  %v2213 = vrot.slane %v2212, 4
  %v2214 = vmax.f32 %v2212, %v2213
  %v2215 = vrot.slane %v2214, 2
  %v2216 = vmax.f32 %v2214, %v2215
  %v2217 = vrot.slane %v2216, 1
  %v2218 = vmax.f32 %v2216, %v2217
  %v2219 = vsel %vm1938, %v1914, -inf
  %v2220 = vrot.slane %v2219, 4
  %v2221 = vmax.f32 %v2219, %v2220
  %v2222 = vrot.slane %v2221, 2
  %v2223 = vmax.f32 %v2221, %v2222
  %v2224 = vrot.slane %v2223, 1
  %v2225 = vmax.f32 %v2223, %v2224
  %v2226 = vsel %vm1938, %v1915, -inf
  %v2227 = vrot.slane %v2226, 4
  %v2228 = vmax.f32 %v2226, %v2227
  %v2229 = vrot.slane %v2228, 2
  %v2230 = vmax.f32 %v2228, %v2229
  %v2231 = vrot.slane %v2230, 1
  %v2232 = vmax.f32 %v2230, %v2231
  %v2233 = vsel %vm1938, %v1916, -inf
  %v2234 = vrot.slane %v2233, 4
  %v2235 = vmax.f32 %v2233, %v2234
  %v2236 = vrot.slane %v2235, 2
  %v2237 = vmax.f32 %v2235, %v2236
  %v2238 = vrot.slane %v2237, 1
  %v2239 = vmax.f32 %v2237, %v2238
  %v2240 = vsel %vm1938, %v1917, -inf
  %v2241 = vrot.slane %v2240, 4
  %v2242 = vmax.f32 %v2240, %v2241
  %v2243 = vrot.slane %v2242, 2
  %v2244 = vmax.f32 %v2242, %v2243
  %v2245 = vrot.slane %v2244, 1
  %v2246 = vmax.f32 %v2244, %v2245
  %v2247 = vsel %vm1938, %v1918, -inf
  %v2248 = vrot.slane %v2247, 4
  %v2249 = vmax.f32 %v2247, %v2248
  %v2250 = vrot.slane %v2249, 2
  %v2251 = vmax.f32 %v2249, %v2250
  %v2252 = vrot.slane %v2251, 1
  %v2253 = vmax.f32 %v2251, %v2252
  %v2254 = vsel %vm1938, %v1919, -inf
  %v2255 = vrot.slane %v2254, 4
  %v2256 = vmax.f32 %v2254, %v2255
  %v2257 = vrot.slane %v2256, 2
  %v2258 = vmax.f32 %v2256, %v2257
  %v2259 = vrot.slane %v2258, 1
  %v2260 = vmax.f32 %v2258, %v2259
  %v2261 = vsel %vm1938, %v1920, -inf
  %v2262 = vrot.slane %v2261, 4
  %v2263 = vmax.f32 %v2261, %v2262
  %v2264 = vrot.slane %v2263, 2
  %v2265 = vmax.f32 %v2263, %v2264
  %v2266 = vrot.slane %v2265, 1
  %v2267 = vmax.f32 %v2265, %v2266
  %v2268 = vsel %vm1938, %v1921, -inf
  %v2269 = vrot.slane %v2268, 4
  %v2270 = vmax.f32 %v2268, %v2269
  %v2271 = vrot.slane %v2270, 2
  %v2272 = vmax.f32 %v2270, %v2271
  %v2273 = vrot.slane %v2272, 1
  %v2274 = vmax.f32 %v2272, %v2273
  %v2275 = vsel %vm1938, %v1922, -inf
  %v2276 = vrot.slane %v2275, 4
  %v2277 = vmax.f32 %v2275, %v2276
  %v2278 = vrot.slane %v2277, 2
  %v2279 = vmax.f32 %v2277, %v2278
  %v2280 = vrot.slane %v2279, 1
  %v2281 = vmax.f32 %v2279, %v2280
  %v2282 = vsel %vm1938, %v1923, -inf
  %v2283 = vrot.slane %v2282, 4
  %v2284 = vmax.f32 %v2282, %v2283
  %v2285 = vrot.slane %v2284, 2
  %v2286 = vmax.f32 %v2284, %v2285
  %v2287 = vrot.slane %v2286, 1
  %v2288 = vmax.f32 %v2286, %v2287
  %v2289 = vsel %vm1938, %v1924, -inf
  %v2290 = vrot.slane %v2289, 4
  %v2291 = vmax.f32 %v2289, %v2290
  %v2292 = vrot.slane %v2291, 2
  %v2293 = vmax.f32 %v2291, %v2292
  %v2294 = vrot.slane %v2293, 1
  %v2295 = vmax.f32 %v2293, %v2294
  %v2296 = vsel %vm1938, %v1925, -inf
  %v2297 = vrot.slane %v2296, 4
  %v2298 = vmax.f32 %v2296, %v2297
  %v2299 = vrot.slane %v2298, 2
  %v2300 = vmax.f32 %v2298, %v2299
  %v2301 = vrot.slane %v2300, 1
  %v2302 = vmax.f32 %v2300, %v2301
  %v2303 = vsel %vm1938, %v1926, -inf
  %v2304 = vrot.slane %v2303, 4
  %v2305 = vmax.f32 %v2303, %v2304
  %v2306 = vrot.slane %v2305, 2
  %v2307 = vmax.f32 %v2305, %v2306
  %v2308 = vrot.slane %v2307, 1
  %v2309 = vmax.f32 %v2307, %v2308
  %v2310 = vsel %vm1938, %v1927, -inf
  %v2311 = vrot.slane %v2310, 4
  %v2312 = vmax.f32 %v2310, %v2311
  %v2313 = vrot.slane %v2312, 2
  %v2314 = vmax.f32 %v2312, %v2313
  %v2315 = vrot.slane %v2314, 1
  %v2316 = vmax.f32 %v2314, %v2315
  %v2317 = vsel %vm1938, %v1928, -inf
  %v2318 = vrot.slane %v2317, 4
  %v2319 = vmax.f32 %v2317, %v2318
  %v2320 = vrot.slane %v2319, 2
  %v2321 = vmax.f32 %v2319, %v2320
  %v2322 = vrot.slane %v2321, 1
  %v2323 = vmax.f32 %v2321, %v2322
  %v2324 = vsel %vm1938, %v1929, -inf
  %v2325 = vrot.slane %v2324, 4
  %v2326 = vmax.f32 %v2324, %v2325
  %v2327 = vrot.slane %v2326, 2
  %v2328 = vmax.f32 %v2326, %v2327
  %v2329 = vrot.slane %v2328, 1
  %v2330 = vmax.f32 %v2328, %v2329
  %v2331 = vsel %vm1938, %v1930, -inf
  %v2332 = vrot.slane %v2331, 4
  %v2333 = vmax.f32 %v2331, %v2332
  %v2334 = vrot.slane %v2333, 2
  %v2335 = vmax.f32 %v2333, %v2334
  %v2336 = vrot.slane %v2335, 1
  %v2337 = vmax.f32 %v2335, %v2336
  %v2338 = vsel %vm1938, %v1931, -inf
  %v2339 = vrot.slane %v2338, 4
  %v2340 = vmax.f32 %v2338, %v2339
  %v2341 = vrot.slane %v2340, 2
  %v2342 = vmax.f32 %v2340, %v2341
  %v2343 = vrot.slane %v2342, 1
  %v2344 = vmax.f32 %v2342, %v2343
  %v2345 = vsel %vm1938, %v1932, -inf
  %v2346 = vrot.slane %v2345, 4
  %v2347 = vmax.f32 %v2345, %v2346
  %v2348 = vrot.slane %v2347, 2
  %v2349 = vmax.f32 %v2347, %v2348
  %v2350 = vrot.slane %v2349, 1
  %v2351 = vmax.f32 %v2349, %v2350
  %v2352 = vsel %vm1938, %v1933, -inf
  %v2353 = vrot.slane %v2352, 4
  %v2354 = vmax.f32 %v2352, %v2353
  %v2355 = vrot.slane %v2354, 2
  %v2356 = vmax.f32 %v2354, %v2355
  %v2357 = vrot.slane %v2356, 1
  %v2358 = vmax.f32 %v2356, %v2357
  %v2359 = vsel %vm1938, %v1934, -inf
  %v2360 = vrot.slane %v2359, 4
  %v2361 = vmax.f32 %v2359, %v2360
  %v2362 = vrot.slane %v2361, 2
  %v2363 = vmax.f32 %v2361, %v2362
  %v2364 = vrot.slane %v2363, 1
  %v2365 = vmax.f32 %v2363, %v2364
  %v2366 = vsel %vm1938, %v1935, -inf
  %v2367 = vrot.slane %v2366, 4
  %v2368 = vmax.f32 %v2366, %v2367
  %v2369 = vrot.slane %v2368, 2
  %v2370 = vmax.f32 %v2368, %v2369
  %v2371 = vrot.slane %v2370, 1
  %v2372 = vmax.f32 %v2370, %v2371
  %v2373 = vsel %vm1938, %v1936, -inf
  %v2374 = vrot.slane %v2373, 4
  %v2375 = vmax.f32 %v2373, %v2374
  %v2376 = vrot.slane %v2375, 2
  %v2377 = vmax.f32 %v2375, %v2376
  %v2378 = vrot.slane %v2377, 1
  %v2379 = vmax.f32 %v2377, %v2378
  %v2380 = vsel %vm1938, %v1937, -inf
  %v2381 = vrot.slane %v2380, 4
  %v2382 = vmax.f32 %v2380, %v2381
  %v2383 = vrot.slane %v2382, 2
  %v2384 = vmax.f32 %v2382, %v2383
  %v2385 = vrot.slane %v2384, 1
  %v2386 = vmax.f32 %v2384, %v2385
  %v2387 = vpack.c.bf16 %v1945, %v1945
  %v2388 = vpack.c.bf16 %v1952, %v1952
  %v2389 = vpack.c.bf16 %v1959, %v1959
  %v2390 = vpack.c.bf16 %v1966, %v1966
  %v2391 = vpack.c.bf16 %v1973, %v1973
  %v2392 = vpack.c.bf16 %v1980, %v1980
  %v2393 = vpack.c.bf16 %v1987, %v1987
  %v2394 = vpack.c.bf16 %v1994, %v1994
  %v2395 = vpack.c.bf16 %v2001, %v2001
  %v2396 = vpack.c.bf16 %v2008, %v2008
  %v2397 = vpack.c.bf16 %v2015, %v2015
  %v2398 = vpack.c.bf16 %v2022, %v2022
  %v2399 = vpack.c.bf16 %v2029, %v2029
  %v2400 = vpack.c.bf16 %v2036, %v2036
  %v2401 = vpack.c.bf16 %v2043, %v2043
  %v2402 = vpack.c.bf16 %v2050, %v2050
  %v2403 = vpack.c.bf16 %v2057, %v2057
  %v2404 = vpack.c.bf16 %v2064, %v2064
  %v2405 = vpack.c.bf16 %v2071, %v2071
  %v2406 = vpack.c.bf16 %v2078, %v2078
  %v2407 = vpack.c.bf16 %v2085, %v2085
  %v2408 = vpack.c.bf16 %v2092, %v2092
  %v2409 = vpack.c.bf16 %v2099, %v2099
  %v2410 = vpack.c.bf16 %v2106, %v2106
  %v2411 = vpack.c.bf16 %v2113, %v2113
  %v2412 = vpack.c.bf16 %v2120, %v2120
  %v2413 = vpack.c.bf16 %v2127, %v2127
  %v2414 = vpack.c.bf16 %v2134, %v2134
  %v2415 = vpack.c.bf16 %v2141, %v2141
  %v2416 = vpack.c.bf16 %v2148, %v2148
  %v2417 = vpack.c.bf16 %v2155, %v2155
  %v2418 = vpack.c.bf16 %v2162, %v2162
  %v2419 = vpack.c.bf16 %v2169, %v2169
  %v2420 = vpack.c.bf16 %v2176, %v2176
  %v2421 = vpack.c.bf16 %v2183, %v2183
  %v2422 = vpack.c.bf16 %v2190, %v2190
  %v2423 = vpack.c.bf16 %v2197, %v2197
  %v2424 = vpack.c.bf16 %v2204, %v2204
  %v2425 = vpack.c.bf16 %v2211, %v2211
  %v2426 = vpack.c.bf16 %v2218, %v2218
  %v2427 = vpack.c.bf16 %v2225, %v2225
  %v2428 = vpack.c.bf16 %v2232, %v2232
  %v2429 = vpack.c.bf16 %v2239, %v2239
  %v2430 = vpack.c.bf16 %v2246, %v2246
  %v2431 = vpack.c.bf16 %v2253, %v2253
  %v2432 = vpack.c.bf16 %v2260, %v2260
  %v2433 = vpack.c.bf16 %v2267, %v2267
  %v2434 = vpack.c.bf16 %v2274, %v2274
  %v2435 = vpack.c.bf16 %v2281, %v2281
  %v2436 = vpack.c.bf16 %v2288, %v2288
  %v2437 = vpack.c.bf16 %v2295, %v2295
  %v2438 = vpack.c.bf16 %v2302, %v2302
  %v2439 = vpack.c.bf16 %v2309, %v2309
  %v2440 = vpack.c.bf16 %v2316, %v2316
  %v2441 = vpack.c.bf16 %v2323, %v2323
  %v2442 = vpack.c.bf16 %v2330, %v2330
  %v2443 = vpack.c.bf16 %v2337, %v2337
  %v2444 = vpack.c.bf16 %v2344, %v2344
  %v2445 = vpack.c.bf16 %v2351, %v2351
  %v2446 = vpack.c.bf16 %v2358, %v2358
  %v2447 = vpack.c.bf16 %v2365, %v2365
  %v2448 = vpack.c.bf16 %v2372, %v2372
  %v2449 = vpack.c.bf16 %v2379, %v2379
  %v2450 = vpack.c.bf16 %v2386, %v2386
  %v2515 = vunpack.c.l.b16 %v2387
  %v2516 = vunpack.c.l.b16 %v2388
  %v2517 = vunpack.c.l.b16 %v2389
  %v2518 = vunpack.c.l.b16 %v2390
  %v2519 = vunpack.c.l.b16 %v2391
  %v2520 = vunpack.c.l.b16 %v2392
  %v2521 = vunpack.c.l.b16 %v2393
  %v2522 = vunpack.c.l.b16 %v2394
  %v2523 = vunpack.c.l.b16 %v2395
  %v2524 = vunpack.c.l.b16 %v2396
  %v2525 = vunpack.c.l.b16 %v2397
  %v2526 = vunpack.c.l.b16 %v2398
  %v2527 = vunpack.c.l.b16 %v2399
  %v2528 = vunpack.c.l.b16 %v2400
  %v2529 = vunpack.c.l.b16 %v2401
  %v2530 = vunpack.c.l.b16 %v2402
  %v2531 = vunpack.c.l.b16 %v2403
  %v2532 = vunpack.c.l.b16 %v2404
  %v2533 = vunpack.c.l.b16 %v2405
  %v2534 = vunpack.c.l.b16 %v2406
  %v2535 = vunpack.c.l.b16 %v2407
  %v2536 = vunpack.c.l.b16 %v2408
  %v2537 = vunpack.c.l.b16 %v2409
  %v2538 = vunpack.c.l.b16 %v2410
  %v2539 = vunpack.c.l.b16 %v2411
  %v2540 = vunpack.c.l.b16 %v2412
  %v2541 = vunpack.c.l.b16 %v2413
  %v2542 = vunpack.c.l.b16 %v2414
  %v2543 = vunpack.c.l.b16 %v2415
  %v2544 = vunpack.c.l.b16 %v2416
  %v2545 = vunpack.c.l.b16 %v2417
  %v2546 = vunpack.c.l.b16 %v2418
  %v2547 = vunpack.c.l.b16 %v2419
  %v2548 = vunpack.c.l.b16 %v2420
  %v2549 = vunpack.c.l.b16 %v2421
  %v2550 = vunpack.c.l.b16 %v2422
  %v2551 = vunpack.c.l.b16 %v2423
  %v2552 = vunpack.c.l.b16 %v2424
  %v2553 = vunpack.c.l.b16 %v2425
  %v2554 = vunpack.c.l.b16 %v2426
  %v2555 = vunpack.c.l.b16 %v2427
  %v2556 = vunpack.c.l.b16 %v2428
  %v2557 = vunpack.c.l.b16 %v2429
  %v2558 = vunpack.c.l.b16 %v2430
  %v2559 = vunpack.c.l.b16 %v2431
  %v2560 = vunpack.c.l.b16 %v2432
  %v2561 = vunpack.c.l.b16 %v2433
  %v2562 = vunpack.c.l.b16 %v2434
  %v2563 = vunpack.c.l.b16 %v2435
  %v2564 = vunpack.c.l.b16 %v2436
  %v2565 = vunpack.c.l.b16 %v2437
  %v2566 = vunpack.c.l.b16 %v2438
  %v2567 = vunpack.c.l.b16 %v2439
  %v2568 = vunpack.c.l.b16 %v2440
  %v2569 = vunpack.c.l.b16 %v2441
  %v2570 = vunpack.c.l.b16 %v2442
  %v2571 = vunpack.c.l.b16 %v2443
  %v2572 = vunpack.c.l.b16 %v2444
  %v2573 = vunpack.c.l.b16 %v2445
  %v2574 = vunpack.c.l.b16 %v2446
  %v2575 = vunpack.c.l.b16 %v2447
  %v2576 = vunpack.c.l.b16 %v2448
  %v2577 = vunpack.c.l.b16 %v2449
  %v2578 = vunpack.c.l.b16 %v2450
  %v2579 = vpack.c.b16 %v2515, %v2515
  %v2580 = vpack.c.b16 %v2516, %v2516
  %v2581 = vpack.c.b16 %v2517, %v2517
  %v2582 = vpack.c.b16 %v2518, %v2518
  %v2583 = vpack.c.b16 %v2519, %v2519
  %v2584 = vpack.c.b16 %v2520, %v2520
  %v2585 = vpack.c.b16 %v2521, %v2521
  %v2586 = vpack.c.b16 %v2522, %v2522
  %v2587 = vpack.c.b16 %v2523, %v2523
  %v2588 = vpack.c.b16 %v2524, %v2524
  %v2589 = vpack.c.b16 %v2525, %v2525
  %v2590 = vpack.c.b16 %v2526, %v2526
  %v2591 = vpack.c.b16 %v2527, %v2527
  %v2592 = vpack.c.b16 %v2528, %v2528
  %v2593 = vpack.c.b16 %v2529, %v2529
  %v2594 = vpack.c.b16 %v2530, %v2530
  %v2595 = vpack.c.b16 %v2531, %v2531
  %v2596 = vpack.c.b16 %v2532, %v2532
  %v2597 = vpack.c.b16 %v2533, %v2533
  %v2598 = vpack.c.b16 %v2534, %v2534
  %v2599 = vpack.c.b16 %v2535, %v2535
  %v2600 = vpack.c.b16 %v2536, %v2536
  %v2601 = vpack.c.b16 %v2537, %v2537
  %v2602 = vpack.c.b16 %v2538, %v2538
  %v2603 = vpack.c.b16 %v2539, %v2539
  %v2604 = vpack.c.b16 %v2540, %v2540
  %v2605 = vpack.c.b16 %v2541, %v2541
  %v2606 = vpack.c.b16 %v2542, %v2542
  %v2607 = vpack.c.b16 %v2543, %v2543
  %v2608 = vpack.c.b16 %v2544, %v2544
  %v2609 = vpack.c.b16 %v2545, %v2545
  %v2610 = vpack.c.b16 %v2546, %v2546
  %v2611 = vpack.c.b16 %v2547, %v2547
  %v2612 = vpack.c.b16 %v2548, %v2548
  %v2613 = vpack.c.b16 %v2549, %v2549
  %v2614 = vpack.c.b16 %v2550, %v2550
  %v2615 = vpack.c.b16 %v2551, %v2551
  %v2616 = vpack.c.b16 %v2552, %v2552
  %v2617 = vpack.c.b16 %v2553, %v2553
  %v2618 = vpack.c.b16 %v2554, %v2554
  %v2619 = vpack.c.b16 %v2555, %v2555
  %v2620 = vpack.c.b16 %v2556, %v2556
  %v2621 = vpack.c.b16 %v2557, %v2557
  %v2622 = vpack.c.b16 %v2558, %v2558
  %v2623 = vpack.c.b16 %v2559, %v2559
  %v2624 = vpack.c.b16 %v2560, %v2560
  %v2625 = vpack.c.b16 %v2561, %v2561
  %v2626 = vpack.c.b16 %v2562, %v2562
  %v2627 = vpack.c.b16 %v2563, %v2563
  %v2628 = vpack.c.b16 %v2564, %v2564
  %v2629 = vpack.c.b16 %v2565, %v2565
  %v2630 = vpack.c.b16 %v2566, %v2566
  %v2631 = vpack.c.b16 %v2567, %v2567
  %v2632 = vpack.c.b16 %v2568, %v2568
  %v2633 = vpack.c.b16 %v2569, %v2569
  %v2634 = vpack.c.b16 %v2570, %v2570
  %v2635 = vpack.c.b16 %v2571, %v2571
  %v2636 = vpack.c.b16 %v2572, %v2572
  %v2637 = vpack.c.b16 %v2573, %v2573
  %v2638 = vpack.c.b16 %v2574, %v2574
  %v2639 = vpack.c.b16 %v2575, %v2575
  %v2640 = vpack.c.b16 %v2576, %v2576
  %v2641 = vpack.c.b16 %v2577, %v2577
  %v2642 = vpack.c.b16 %v2578, %v2578
  %v2643 = vunpack.c.l.b16 %v2579
  %v2644 = vunpack.c.l.b16 %v2580
  %v2645 = vunpack.c.l.b16 %v2581
  %v2646 = vunpack.c.l.b16 %v2582
  %v2647 = vunpack.c.l.b16 %v2583
  %v2648 = vunpack.c.l.b16 %v2584
  %v2649 = vunpack.c.l.b16 %v2585
  %v2650 = vunpack.c.l.b16 %v2586
  %v2651 = vunpack.c.l.b16 %v2587
  %v2652 = vunpack.c.l.b16 %v2588
  %v2653 = vunpack.c.l.b16 %v2589
  %v2654 = vunpack.c.l.b16 %v2590
  %v2655 = vunpack.c.l.b16 %v2591
  %v2656 = vunpack.c.l.b16 %v2592
  %v2657 = vunpack.c.l.b16 %v2593
  %v2658 = vunpack.c.l.b16 %v2594
  %v2659 = vunpack.c.l.b16 %v2595
  %v2660 = vunpack.c.l.b16 %v2596
  %v2661 = vunpack.c.l.b16 %v2597
  %v2662 = vunpack.c.l.b16 %v2598
  %v2663 = vunpack.c.l.b16 %v2599
  %v2664 = vunpack.c.l.b16 %v2600
  %v2665 = vunpack.c.l.b16 %v2601
  %v2666 = vunpack.c.l.b16 %v2602
  %v2667 = vunpack.c.l.b16 %v2603
  %v2668 = vunpack.c.l.b16 %v2604
  %v2669 = vunpack.c.l.b16 %v2605
  %v2670 = vunpack.c.l.b16 %v2606
  %v2671 = vunpack.c.l.b16 %v2607
  %v2672 = vunpack.c.l.b16 %v2608
  %v2673 = vunpack.c.l.b16 %v2609
  %v2674 = vunpack.c.l.b16 %v2610
  %v2675 = vunpack.c.l.b16 %v2611
  %v2676 = vunpack.c.l.b16 %v2612
  %v2677 = vunpack.c.l.b16 %v2613
  %v2678 = vunpack.c.l.b16 %v2614
  %v2679 = vunpack.c.l.b16 %v2615
  %v2680 = vunpack.c.l.b16 %v2616
  %v2681 = vunpack.c.l.b16 %v2617
  %v2682 = vunpack.c.l.b16 %v2618
  %v2683 = vunpack.c.l.b16 %v2619
  %v2684 = vunpack.c.l.b16 %v2620
  %v2685 = vunpack.c.l.b16 %v2621
  %v2686 = vunpack.c.l.b16 %v2622
  %v2687 = vunpack.c.l.b16 %v2623
  %v2688 = vunpack.c.l.b16 %v2624
  %v2689 = vunpack.c.l.b16 %v2625
  %v2690 = vunpack.c.l.b16 %v2626
  %v2691 = vunpack.c.l.b16 %v2627
  %v2692 = vunpack.c.l.b16 %v2628
  %v2693 = vunpack.c.l.b16 %v2629
  %v2694 = vunpack.c.l.b16 %v2630
  %v2695 = vunpack.c.l.b16 %v2631
  %v2696 = vunpack.c.l.b16 %v2632
  %v2697 = vunpack.c.l.b16 %v2633
  %v2698 = vunpack.c.l.b16 %v2634
  %v2699 = vunpack.c.l.b16 %v2635
  %v2700 = vunpack.c.l.b16 %v2636
  %v2701 = vunpack.c.l.b16 %v2637
  %v2702 = vunpack.c.l.b16 %v2638
  %v2703 = vunpack.c.l.b16 %v2639
  %v2704 = vunpack.c.l.b16 %v2640
  %v2705 = vunpack.c.l.b16 %v2641
  %v2706 = vunpack.c.l.b16 %v2642
  %vm2707 = vcmask 1041409
  %v2708 = vsel %vm2707, %v2644, %v2643
  %vm2709 = vcmask 1042434
  %v2710 = vsel %vm2709, %v2645, %v2708
  %vm2711 = vcmask 1043459
  %v2712 = vsel %vm2711, %v2646, %v2710
  %vm2713 = vcmask 1044484
  %v2714 = vsel %vm2713, %v2647, %v2712
  %vm2715 = vcmask 1045509
  %v2716 = vsel %vm2715, %v2648, %v2714
  %vm2717 = vcmask 1046534
  %v2718 = vsel %vm2717, %v2649, %v2716
  %vm2719 = vcmask 1047559
  %v2720 = vsel %vm2719, %v2650, %v2718
  %v2721 = vsel %vm2707, %v2652, %v2651
  %v2722 = vsel %vm2709, %v2653, %v2721
  %v2723 = vsel %vm2711, %v2654, %v2722
  %v2724 = vsel %vm2713, %v2655, %v2723
  %v2725 = vsel %vm2715, %v2656, %v2724
  %v2726 = vsel %vm2717, %v2657, %v2725
  %v2727 = vsel %vm2719, %v2658, %v2726
  %v2728 = vsel %vm2707, %v2660, %v2659
  %v2729 = vsel %vm2709, %v2661, %v2728
  %v2730 = vsel %vm2711, %v2662, %v2729
  %v2731 = vsel %vm2713, %v2663, %v2730
  %v2732 = vsel %vm2715, %v2664, %v2731
  %v2733 = vsel %vm2717, %v2665, %v2732
  %v2734 = vsel %vm2719, %v2666, %v2733
  %v2735 = vsel %vm2707, %v2668, %v2667
  %v2736 = vsel %vm2709, %v2669, %v2735
  %v2737 = vsel %vm2711, %v2670, %v2736
  %v2738 = vsel %vm2713, %v2671, %v2737
  %v2739 = vsel %vm2715, %v2672, %v2738
  %v2740 = vsel %vm2717, %v2673, %v2739
  %v2741 = vsel %vm2719, %v2674, %v2740
  %v2742 = vsel %vm2707, %v2676, %v2675
  %v2743 = vsel %vm2709, %v2677, %v2742
  %v2744 = vsel %vm2711, %v2678, %v2743
  %v2745 = vsel %vm2713, %v2679, %v2744
  %v2746 = vsel %vm2715, %v2680, %v2745
  %v2747 = vsel %vm2717, %v2681, %v2746
  %v2748 = vsel %vm2719, %v2682, %v2747
  %v2749 = vsel %vm2707, %v2684, %v2683
  %v2750 = vsel %vm2709, %v2685, %v2749
  %v2751 = vsel %vm2711, %v2686, %v2750
  %v2752 = vsel %vm2713, %v2687, %v2751
  %v2753 = vsel %vm2715, %v2688, %v2752
  %v2754 = vsel %vm2717, %v2689, %v2753
  %v2755 = vsel %vm2719, %v2690, %v2754
  %v2756 = vsel %vm2707, %v2692, %v2691
  %v2757 = vsel %vm2709, %v2693, %v2756
  %v2758 = vsel %vm2711, %v2694, %v2757
  %v2759 = vsel %vm2713, %v2695, %v2758
  %v2760 = vsel %vm2715, %v2696, %v2759
  %v2761 = vsel %vm2717, %v2697, %v2760
  %v2762 = vsel %vm2719, %v2698, %v2761
  %v2763 = vsel %vm2707, %v2700, %v2699
  %v2764 = vsel %vm2709, %v2701, %v2763
  %v2765 = vsel %vm2711, %v2702, %v2764
  %v2766 = vsel %vm2713, %v2703, %v2765
  %v2767 = vsel %vm2715, %v2704, %v2766
  %v2768 = vsel %vm2717, %v2705, %v2767
  %v2769 = vsel %vm2719, %v2706, %v2768
  %v2770 = vpack.c.b16 %v2720, %v2720
  %v2771 = vpack.c.b16 %v2727, %v2727
  %v2772 = vpack.c.b16 %v2734, %v2734
  %v2773 = vpack.c.b16 %v2741, %v2741
  %v2774 = vpack.c.b16 %v2748, %v2748
  %v2775 = vpack.c.b16 %v2755, %v2755
  %v2776 = vpack.c.b16 %v2762, %v2762
  %v2777 = vpack.c.b16 %v2769, %v2769
  %vm2786 = vcmask 257024
  %2787 = vst.msk [vmem:[%s4] sm:$0xf] %vm2786, %v2770
  %2788 = vst.msk [vmem:[%s4 + $0x4] sm:$0xf] %vm2786, %v2771
  %2789 = vst.msk [vmem:[%s4 + $0x8] sm:$0xf] %vm2786, %v2772
  %2790 = vst.msk [vmem:[%s4 + $0xc] sm:$0xf] %vm2786, %v2773
  %2791 = vst.msk [vmem:[%s4 + $0x10] sm:$0xf] %vm2786, %v2774
  %2792 = vst.msk [vmem:[%s4 + $0x14] sm:$0xf] %vm2786, %v2775
  %2793 = vst.msk [vmem:[%s4 + $0x18] sm:$0xf] %vm2786, %v2776
  %2794 = vst.msk [vmem:[%s4 + $0x1c] sm:$0xf] %vm2786, %v2777
  // Predicated region
  $region18: #{tpu_custom_call.1} parent=0 // pred_check
    _
  $region19: #{tpu_custom_call.1} parent=0 // pred_check_branch
    %2796 = sbr.rel (0) target = $region21
  $region20: #{tpu_custom_call.1} parent=0 // pred_region
    _
  $region21: #{tpu_custom_call.1} parent=0 // pred_fallthru
    _
  // Predicated region
  $region22: #{tpu_custom_call.1} parent=0 // pred_check
    _
  $region23: #{tpu_custom_call.1} parent=0 // pred_check_branch
    %2798 = sbr.rel (0) target = $region25
  $region24: #{tpu_custom_call.1} parent=0 // pred_region
    _
  $region25: #{tpu_custom_call.1} parent=0 // pred_fallthru
    _

</llo_original>
